<compile_context>
chip_gen: v7x
topology: tpu7x:2x2x1
jax: 0.10.0
libtpu: 0.0.40
codegen_flags: <defaults>
</compile_context>

<pallas_src>
import functools
import re

import jax
import jax.numpy as jnp
from jax import lax
from jax.experimental import pallas as pl
from jax.experimental.pallas import tpu as pltpu

_LANE = 128      # lane width: feature dims padded to multiples of this
_SUBLANE = 8     # sublane granularity for the batch tile


def _round_up(x, m):
    return (x + m - 1) // m * m


def _cdiv(a, b):
    return (a + b - 1) // b


def _tpu_generation():
    """Best-effort TPU generation number (5, 6, 7, ...); 0 if unknown."""
    try:
        kind = jax.devices()[0].device_kind
    except Exception:
        return 0
    m = re.search(r"(\d+)", str(kind))
    return int(m.group(1)) if m else 0


def _vmem_limit_bytes(gen):
    """~80% of per-core VMEM, capped at 100 MiB (keeps headroom on v7x)."""
    cap = None
    try:
        cap = int(pltpu.get_tpu_info().vmem_capacity_bytes)
    except Exception:
        cap = None
    if cap is None or cap <= 0:
        cap = 128 * 1024 * 1024 if gen in (5, 6) else 64 * 1024 * 1024
    return min(int(cap * 0.8), 100 * 1024 * 1024)


def _mish(x, compute_dtype):
    # mish(x) = x * tanh(softplus(x))
    #         = x * e(e+2) / (e(e+2) + 2)          with e = exp(x)
    # -> one EUP exp + one reciprocal/div (vs exp+log+tanh).
    xd = x.astype(compute_dtype)
    xc = jnp.minimum(xd, 20.0)                     # avoid overflow in e^2
    e = jnp.exp(xc)
    t = e * (e + 2.0)
    if compute_dtype == jnp.float32:
        y = xd * t * pl.reciprocal(t + 2.0, approx=True)
    else:
        # bf16 path (v6e/v7x): keep everything in bf16 on the VPU/EUP.
        y = xd * (t / (t + 2.0))
    return jnp.where(xd > 20.0, xd, y)             # mish(x) ~= x for large x


def ideal_mlp_kernel(x_ref,
                     w1_ref, b1_ref,
                     w2_ref, b2_ref,
                     w3_ref, b3_ref,
                     w4_ref, b4_ref,
                     o_ref,
                     *, d_out, mish_dtype):
    # x tile arrives as bf16 (cast done once in the wrapper); MXU operands are
    # bf16 with f32 accumulation, biases are f32.
    xb = x_ref[...]

    # trans[0]: Linear(d_in, d_in) + Mish
    z = jnp.dot(xb, w1_ref[...], preferred_element_type=jnp.float32) + b1_ref[...]
    z = _mish(z, mish_dtype)

    # trans[2]: Linear(d_in, d_in) + Mish
    z = jnp.dot(z.astype(jnp.bfloat16), w2_ref[...],
                preferred_element_type=jnp.float32) + b2_ref[...]
    z = _mish(z, mish_dtype)

    # trans[4]: Linear(d_in, h1)
    z = jnp.dot(z.astype(jnp.bfloat16), w3_ref[...],
                preferred_element_type=jnp.float32) + b3_ref[...]

    # perceptron: Linear(h1, d_out)
    z = jnp.dot(z.astype(jnp.bfloat16), w4_ref[...],
                preferred_element_type=jnp.float32) + b4_ref[...]

    # Mask padded logit columns before the softmax normalization.
    d_out_p = o_ref.shape[-1]
    if d_out < d_out_p:
        col = lax.broadcasted_iota(jnp.int32, z.shape, dimension=1)
        z = jnp.where(col < d_out, z, jnp.float32(-1e30))

    # log_softmax over last dim (numerically stable, f32); lane-dense store.
    m = jnp.max(z, axis=-1, keepdims=True)
    s = z - m
    lse = jnp.log(jnp.sum(jnp.exp(s), axis=-1, keepdims=True))
    o_ref[...] = (s - lse).astype(o_ref.dtype)


def init_params(key, d_in, h1, d_out):
    """Deterministic synthetic init (PyTorch-style). Weights stored as (in, out), f32."""
    ks = jax.random.split(key, 8)

    def lin(kw, kb, fan_in, fan_out):
        bound = 1.0 / jnp.sqrt(fan_in)
        w = jax.random.uniform(kw, (fan_in, fan_out), jnp.float32, -bound, bound)
        b = jax.random.uniform(kb, (1, fan_out), jnp.float32, -bound, bound)
        return w, b

    w1, b1 = lin(ks[0], ks[1], d_in, d_in)
    w2, b2 = lin(ks[2], ks[3], d_in, d_in)
    w3, b3 = lin(ks[4], ks[5], d_in, h1)
    w4, b4 = lin(ks[6], ks[7], h1, d_out)
    return dict(w1=w1, b1=b1, w2=w2, b2=b2, w3=w3, b3=b3, w4=w4, b4=b4)


def prepare_params(p):
    """Zero-pad feature dims to multiples of 128 and cast weights to bf16 (once)."""
    d_in = p["w1"].shape[0]
    h1 = p["w3"].shape[1]
    d_out = p["w4"].shape[1]
    d_in_p = _round_up(d_in, _LANE)
    h1_p = _round_up(h1, _LANE)
    d_out_p = _round_up(d_out, _LANE)

    def pad_w(w, r, c):
        return jnp.pad(w, ((0, r - w.shape[0]), (0, c - w.shape[1]))).astype(jnp.bfloat16)

    def pad_b(b, c):
        return jnp.pad(b, ((0, 0), (0, c - b.shape[1]))).astype(jnp.float32)

    return dict(
        w1=pad_w(p["w1"], d_in_p, d_in_p), b1=pad_b(p["b1"], d_in_p),
        w2=pad_w(p["w2"], d_in_p, d_in_p), b2=pad_b(p["b2"], d_in_p),
        w3=pad_w(p["w3"], d_in_p, h1_p),   b3=pad_b(p["b3"], h1_p),
        w4=pad_w(p["w4"], h1_p, d_out_p),  b4=pad_b(p["b4"], d_out_p),
        dims=(d_in, h1, d_out),
    )


def ideal_mlp_forward(x, prep, *, tile_b=None, out_dtype=jnp.float32):
    """x: (B, d_in) f32; prep: output of prepare_params (padded bf16 weights, f32 biases)."""
    B, d_in = x.shape
    d_in_real, h1_real, d_out = prep["dims"]
    assert d_in == d_in_real, "x feature dim does not match params"

    d_in_p = prep["w1"].shape[0]
    h1_p = prep["w3"].shape[1]
    d_out_p = prep["w4"].shape[1]

    gen = _tpu_generation()
    # bf16 VPU/EUP exists on v6e/v7x; keep the Mish chain f32 on v5e/older.
    mish_dtype = jnp.bfloat16 if gen >= 6 else jnp.float32

    # ---- batch tiling ------------------------------------------------------
    # Batch is only rounded up to the sublane multiple (8); the grid's last
    # block may be ragged. No forced 2x padding for small batches.
    B8 = _round_up(B, _SUBLANE)
    if tile_b is None:
        tile_b = 256 if gen >= 7 else 512      # 128 MiB VMEM chips take taller tiles
    tile_b = max(_SUBLANE, _round_up(min(tile_b, B8), _SUBLANE))
    # Prefer >=2 grid steps (DMA/compute overlap; both v7x TensorCores) only
    # when there are enough real rows to give both steps real work.
    if B8 >= 2 * _SUBLANE and _cdiv(B8, tile_b) < 2:
        tile_b = _round_up(_cdiv(B8, 2), _SUBLANE)
    n_steps = _cdiv(B8, tile_b)

    # Input streamed as bf16; pad only the feature dim (to 128) and batch to
    # the sublane multiple.
    x_p = x.astype(jnp.bfloat16)
    if B8 != B or d_in_p != d_in:
        x_p = jnp.pad(x_p, ((0, B8 - B), (0, d_in_p - d_in)))

    vmem_limit = _vmem_limit_bytes(gen)

    # Advisory cost estimate for XLA scheduling around the custom call.
    flops = 2 * B8 * (2 * d_in_p * d_in_p + d_in_p * h1_p + h1_p * d_out_p)
    transcendentals = B8 * (2 * 2 * d_in_p + d_out_p)  # 2 mish layers + softmax exp
    bytes_accessed = (
        B8 * d_in_p * 2 + B8 * d_out_p * jnp.dtype(out_dtype).itemsize
        + sum(int(prep[k].size) * 2 for k in ("w1", "w2", "w3", "w4"))
        + sum(int(prep[k].size) * 4 for k in ("b1", "b2", "b3", "b4"))
    )

    kernel = functools.partial(ideal_mlp_kernel, d_out=d_out, mish_dtype=mish_dtype)

    def run(single_buffer_weights):
        if single_buffer_weights:
            # Grid-invariant operands: single-buffer (index_map is constant, so
            # the second pipeline buffer would never be used).
            def w_spec(shape):
                return pl.BlockSpec(shape, lambda i: (0, 0),
                                    pipeline_mode=pl.Buffered(1))
        else:
            def w_spec(shape):
                return pl.BlockSpec(shape, lambda i: (0, 0))

        return pl.pallas_call(
            kernel,
            out_shape=jax.ShapeDtypeStruct((B8, d_out_p), out_dtype),
            grid=(n_steps,),
            in_specs=[
                pl.BlockSpec((tile_b, d_in_p), lambda i: (i, 0)),   # x tile (bf16)
                w_spec((d_in_p, d_in_p)), w_spec((1, d_in_p)),      # layer 1
                w_spec((d_in_p, d_in_p)), w_spec((1, d_in_p)),      # layer 2
                w_spec((d_in_p, h1_p)),   w_spec((1, h1_p)),        # layer 3
                w_spec((h1_p, d_out_p)),  w_spec((1, d_out_p)),     # perceptron
            ],
            out_specs=pl.BlockSpec((tile_b, d_out_p), lambda i: (i, 0)),
            compiler_params=pltpu.CompilerParams(
                dimension_semantics=("parallel",),
                vmem_limit_bytes=int(vmem_limit),
            ),
            cost_estimate=pl.CostEstimate(
                flops=int(flops),
                transcendentals=int(transcendentals),
                bytes_accessed=int(bytes_accessed),
            ),
        )(x_p,
          prep["w1"], prep["b1"],
          prep["w2"], prep["b2"],
          prep["w3"], prep["b3"],
          prep["w4"], prep["b4"])

    try:
        out_p = run(single_buffer_weights=True)
    except Exception:
        # Fallback for JAX builds that reject pipeline_mode=pl.Buffered(1):
        # default double-buffered weights (correct, slightly more VMEM).
        out_p = run(single_buffer_weights=False)

    # Strip batch/feature padding (no-op slice when nothing was padded).
    return out_p[:B, :d_out]


def ideal_mlp_ref(x, p):
    """Pure-JAX f32 reference (matches the PyTorch module)."""
    def mish(v):
        return v * jnp.tanh(jnp.logaddexp(v, 0.0))
    z = mish(x @ p["w1"] + p["b1"])
    z = mish(z @ p["w2"] + p["b2"])
    z = z @ p["w3"] + p["b3"]
    z = z @ p["w4"] + p["b4"]
    return jax.nn.log_softmax(z, axis=-1)


if __name__ == "__main__":
    B, d_in, h1, d_out = 8, 32, 64, 16

    key = jax.random.PRNGKey(0)
    kx, kp = jax.random.split(key)
    x = jax.random.normal(kx, (B, d_in), dtype=jnp.float32)
    params = init_params(kp, d_in, h1, d_out)
    prep = prepare_params(params)

    out = ideal_mlp_forward(x, prep)
    out = jax.block_until_ready(out)

    ref = ideal_mlp_ref(x, params)
    assert out.shape == (B, d_out)
    max_err = float(jnp.max(jnp.abs(out - ref)))
    assert max_err < 5e-2, f"mismatch vs reference: max abs err {max_err}"

    print("KERNEL_OK")
</pallas_src>

<mosaic_0001>
module attributes {stable_mosaic.version = 11 : i64} {
  func.func @ideal_mlp_kernel(%arg0: i32, %arg1: memref<8x128xbf16, #tpu.memory_space<vmem>>, %arg2: memref<128x128xbf16, #tpu.memory_space<vmem>>, %arg3: memref<1x128xf32, #tpu.memory_space<vmem>>, %arg4: memref<128x128xbf16, #tpu.memory_space<vmem>>, %arg5: memref<1x128xf32, #tpu.memory_space<vmem>>, %arg6: memref<128x128xbf16, #tpu.memory_space<vmem>>, %arg7: memref<1x128xf32, #tpu.memory_space<vmem>>, %arg8: memref<128x128xbf16, #tpu.memory_space<vmem>>, %arg9: memref<1x128xf32, #tpu.memory_space<vmem>>, %arg10: memref<8x128xf32, #tpu.memory_space<vmem>>) attributes {dimension_semantics = [#tpu.dimension_semantics<parallel>], iteration_bounds = array<i64: 1>, scalar_prefetch = 0 : i64, scratch_operands = 0 : i64, tpu.core_type = #tpu.core_type<tc>, window_params = [{transform_indices = @transform_0, window_bounds = array<i64: 8, 128>}, {pipeline_mode = #tpu.pipeline_mode<synchronous>, transform_indices = @transform_1, window_bounds = array<i64: 128, 128>}, {pipeline_mode = #tpu.pipeline_mode<synchronous>, transform_indices = @transform_2, window_bounds = array<i64: 1, 128>}, {pipeline_mode = #tpu.pipeline_mode<synchronous>, transform_indices = @transform_3, window_bounds = array<i64: 128, 128>}, {pipeline_mode = #tpu.pipeline_mode<synchronous>, transform_indices = @transform_4, window_bounds = array<i64: 1, 128>}, {pipeline_mode = #tpu.pipeline_mode<synchronous>, transform_indices = @transform_5, window_bounds = array<i64: 128, 128>}, {pipeline_mode = #tpu.pipeline_mode<synchronous>, transform_indices = @transform_6, window_bounds = array<i64: 1, 128>}, {pipeline_mode = #tpu.pipeline_mode<synchronous>, transform_indices = @transform_7, window_bounds = array<i64: 128, 128>}, {pipeline_mode = #tpu.pipeline_mode<synchronous>, transform_indices = @transform_8, window_bounds = array<i64: 1, 128>}, {transform_indices = @transform_9, window_bounds = array<i64: 8, 128>}]} {
    %c0 = arith.constant 0 : index
    %c0_0 = arith.constant 0 : index
    %0 = vector.load %arg1[%c0, %c0_0] : memref<8x128xbf16, #tpu.memory_space<vmem>>, vector<8x128xbf16>
    %c0_1 = arith.constant 0 : index
    %c0_2 = arith.constant 0 : index
    %1 = vector.load %arg2[%c0_1, %c0_2] : memref<128x128xbf16, #tpu.memory_space<vmem>>, vector<128x128xbf16>
    %cst = arith.constant dense<0.000000e+00> : vector<8x128xf32>
    %2 = tpu.matmul %0, %1, %cst {dimension_numbers = #tpu.dot_dimension_numbers<[1], [0], [0], [1], [0, 0, 1, 1], [], []>} : vector<8x128xbf16>, vector<128x128xbf16>, vector<8x128xf32> -> vector<8x128xf32>
    %c0_3 = arith.constant 0 : index
    %c0_4 = arith.constant 0 : index
    %3 = vector.load %arg3[%c0_3, %c0_4] : memref<1x128xf32, #tpu.memory_space<vmem>>, vector<1x128xf32>
    %4 = vector.broadcast %3 : vector<1x128xf32> to vector<8x128xf32>
    %5 = arith.addf %2, %4 : vector<8x128xf32>
    %cst_5 = arith.constant 2.000000e+01 : f32
    %6 = vector.broadcast %cst_5 : f32 to vector<8x128xf32>
    %7 = arith.minimumf %5, %6 : vector<8x128xf32>
    %8 = math.exp %7 : vector<8x128xf32>
    %cst_6 = arith.constant 2.000000e+00 : f32
    %9 = vector.broadcast %cst_6 : f32 to vector<8x128xf32>
    %10 = arith.addf %8, %9 : vector<8x128xf32>
    %11 = arith.mulf %8, %10 : vector<8x128xf32>
    %12 = arith.mulf %5, %11 : vector<8x128xf32>
    %cst_7 = arith.constant 2.000000e+00 : f32
    %13 = vector.broadcast %cst_7 : f32 to vector<8x128xf32>
    %14 = arith.addf %11, %13 : vector<8x128xf32>
    %15 = tpu.reciprocal %14 {approx = true} : vector<8x128xf32> -> vector<8x128xf32>
    %16 = arith.mulf %12, %15 : vector<8x128xf32>
    %cst_8 = arith.constant 2.000000e+01 : f32
    %17 = vector.broadcast %cst_8 : f32 to vector<8x128xf32>
    %18 = arith.cmpf ogt, %5, %17 : vector<8x128xf32>
    %19 = arith.select %18, %5, %16 : vector<8x128xi1>, vector<8x128xf32>
    %20 = arith.truncf %19 : vector<8x128xf32> to vector<8x128xbf16>
    %c0_9 = arith.constant 0 : index
    %c0_10 = arith.constant 0 : index
    %21 = vector.load %arg4[%c0_9, %c0_10] : memref<128x128xbf16, #tpu.memory_space<vmem>>, vector<128x128xbf16>
    %cst_11 = arith.constant dense<0.000000e+00> : vector<8x128xf32>
    %22 = tpu.matmul %20, %21, %cst_11 {dimension_numbers = #tpu.dot_dimension_numbers<[1], [0], [0], [1], [0, 0, 1, 1], [], []>} : vector<8x128xbf16>, vector<128x128xbf16>, vector<8x128xf32> -> vector<8x128xf32>
    %c0_12 = arith.constant 0 : index
    %c0_13 = arith.constant 0 : index
    %23 = vector.load %arg5[%c0_12, %c0_13] : memref<1x128xf32, #tpu.memory_space<vmem>>, vector<1x128xf32>
    %24 = vector.broadcast %23 : vector<1x128xf32> to vector<8x128xf32>
    %25 = arith.addf %22, %24 : vector<8x128xf32>
    %cst_14 = arith.constant 2.000000e+01 : f32
    %26 = vector.broadcast %cst_14 : f32 to vector<8x128xf32>
    %27 = arith.minimumf %25, %26 : vector<8x128xf32>
    %28 = math.exp %27 : vector<8x128xf32>
    %cst_15 = arith.constant 2.000000e+00 : f32
    %29 = vector.broadcast %cst_15 : f32 to vector<8x128xf32>
    %30 = arith.addf %28, %29 : vector<8x128xf32>
    %31 = arith.mulf %28, %30 : vector<8x128xf32>
    %32 = arith.mulf %25, %31 : vector<8x128xf32>
    %cst_16 = arith.constant 2.000000e+00 : f32
    %33 = vector.broadcast %cst_16 : f32 to vector<8x128xf32>
    %34 = arith.addf %31, %33 : vector<8x128xf32>
    %35 = tpu.reciprocal %34 {approx = true} : vector<8x128xf32> -> vector<8x128xf32>
    %36 = arith.mulf %32, %35 : vector<8x128xf32>
    %cst_17 = arith.constant 2.000000e+01 : f32
    %37 = vector.broadcast %cst_17 : f32 to vector<8x128xf32>
    %38 = arith.cmpf ogt, %25, %37 : vector<8x128xf32>
    %39 = arith.select %38, %25, %36 : vector<8x128xi1>, vector<8x128xf32>
    %40 = arith.truncf %39 : vector<8x128xf32> to vector<8x128xbf16>
    %c0_18 = arith.constant 0 : index
    %c0_19 = arith.constant 0 : index
    %41 = vector.load %arg6[%c0_18, %c0_19] : memref<128x128xbf16, #tpu.memory_space<vmem>>, vector<128x128xbf16>
    %cst_20 = arith.constant dense<0.000000e+00> : vector<8x128xf32>
    %42 = tpu.matmul %40, %41, %cst_20 {dimension_numbers = #tpu.dot_dimension_numbers<[1], [0], [0], [1], [0, 0, 1, 1], [], []>} : vector<8x128xbf16>, vector<128x128xbf16>, vector<8x128xf32> -> vector<8x128xf32>
    %c0_21 = arith.constant 0 : index
    %c0_22 = arith.constant 0 : index
    %43 = vector.load %arg7[%c0_21, %c0_22] : memref<1x128xf32, #tpu.memory_space<vmem>>, vector<1x128xf32>
    %44 = vector.broadcast %43 : vector<1x128xf32> to vector<8x128xf32>
    %45 = arith.addf %42, %44 : vector<8x128xf32>
    %46 = arith.truncf %45 : vector<8x128xf32> to vector<8x128xbf16>
    %c0_23 = arith.constant 0 : index
    %c0_24 = arith.constant 0 : index
    %47 = vector.load %arg8[%c0_23, %c0_24] : memref<128x128xbf16, #tpu.memory_space<vmem>>, vector<128x128xbf16>
    %cst_25 = arith.constant dense<0.000000e+00> : vector<8x128xf32>
    %48 = tpu.matmul %46, %47, %cst_25 {dimension_numbers = #tpu.dot_dimension_numbers<[1], [0], [0], [1], [0, 0, 1, 1], [], []>} : vector<8x128xbf16>, vector<128x128xbf16>, vector<8x128xf32> -> vector<8x128xf32>
    %c0_26 = arith.constant 0 : index
    %c0_27 = arith.constant 0 : index
    %49 = vector.load %arg9[%c0_26, %c0_27] : memref<1x128xf32, #tpu.memory_space<vmem>>, vector<1x128xf32>
    %50 = vector.broadcast %49 : vector<1x128xf32> to vector<8x128xf32>
    %51 = arith.addf %48, %50 : vector<8x128xf32>
    %52 = tpu.iota {dimensions = array<i32: 1>} : vector<8x128xi32>
    %c16_i32 = arith.constant 16 : i32
    %53 = vector.broadcast %c16_i32 : i32 to vector<8x128xi32>
    %54 = arith.cmpi slt, %52, %53 : vector<8x128xi32>
    %cst_28 = arith.constant -1.000000e+30 : f32
    %55 = vector.broadcast %cst_28 : f32 to vector<8x128xf32>
    %56 = arith.select %54, %51, %55 : vector<8x128xi1>, vector<8x128xf32>
    %cst_29 = arith.constant dense<0xFF800000> : vector<8xf32>
    %57 = vector.multi_reduction <maximumf>, %56, %cst_29 [1] : vector<8x128xf32> to vector<8xf32>
    %58 = vector.shape_cast %57 : vector<8xf32> to vector<8x1xf32>
    %59 = vector.broadcast %58 : vector<8x1xf32> to vector<8x128xf32>
    %60 = arith.subf %56, %59 : vector<8x128xf32>
    %61 = math.exp %60 : vector<8x128xf32>
    %cst_30 = arith.constant dense<0.000000e+00> : vector<8xf32>
    %62 = vector.multi_reduction <add>, %61, %cst_30 [1] : vector<8x128xf32> to vector<8xf32>
    %63 = vector.shape_cast %62 : vector<8xf32> to vector<8x1xf32>
    %64 = math.log %63 : vector<8x1xf32>
    %65 = vector.broadcast %64 : vector<8x1xf32> to vector<8x128xf32>
    %66 = arith.subf %60, %65 : vector<8x128xf32>
    %c0_31 = arith.constant 0 : index
    %c0_32 = arith.constant 0 : index
    %67 = vector.load %arg10[%c0_31, %c0_32] : memref<8x128xf32, #tpu.memory_space<vmem>>, vector<8x128xf32>
    tpu.vector_store %arg10[%c0_31, %c0_32], %66 {strides = array<i32>} : memref<8x128xf32, #tpu.memory_space<vmem>>, vector<8x128xf32>,
    return
  }
  func.func @transform_0(%arg0: i32) -> (i32, i32) {
    %c0_i32 = arith.constant 0 : i32
    %c0_i32_0 = arith.constant 0 : i32
    return %arg0, %c0_i32 : i32, i32
  }
  func.func @transform_1(%arg0: i32) -> (i32, i32) {
    %c0_i32 = arith.constant 0 : i32
    %c0_i32_0 = arith.constant 0 : i32
    %c0_i32_1 = arith.constant 0 : i32
    return %c0_i32, %c0_i32_0 : i32, i32
  }
  func.func @transform_2(%arg0: i32) -> (i32, i32) {
    %c0_i32 = arith.constant 0 : i32
    %c0_i32_0 = arith.constant 0 : i32
    %c0_i32_1 = arith.constant 0 : i32
    return %c0_i32, %c0_i32_0 : i32, i32
  }
  func.func @transform_3(%arg0: i32) -> (i32, i32) {
    %c0_i32 = arith.constant 0 : i32
    %c0_i32_0 = arith.constant 0 : i32
    %c0_i32_1 = arith.constant 0 : i32
    return %c0_i32, %c0_i32_0 : i32, i32
  }
  func.func @transform_4(%arg0: i32) -> (i32, i32) {
    %c0_i32 = arith.constant 0 : i32
    %c0_i32_0 = arith.constant 0 : i32
    %c0_i32_1 = arith.constant 0 : i32
    return %c0_i32, %c0_i32_0 : i32, i32
  }
  func.func @transform_5(%arg0: i32) -> (i32, i32) {
    %c0_i32 = arith.constant 0 : i32
    %c0_i32_0 = arith.constant 0 : i32
    %c0_i32_1 = arith.constant 0 : i32
    return %c0_i32, %c0_i32_0 : i32, i32
  }
  func.func @transform_6(%arg0: i32) -> (i32, i32) {
    %c0_i32 = arith.constant 0 : i32
    %c0_i32_0 = arith.constant 0 : i32
    %c0_i32_1 = arith.constant 0 : i32
    return %c0_i32, %c0_i32_0 : i32, i32
  }
  func.func @transform_7(%arg0: i32) -> (i32, i32) {
    %c0_i32 = arith.constant 0 : i32
    %c0_i32_0 = arith.constant 0 : i32
    %c0_i32_1 = arith.constant 0 : i32
    return %c0_i32, %c0_i32_0 : i32, i32
  }
  func.func @transform_8(%arg0: i32) -> (i32, i32) {
    %c0_i32 = arith.constant 0 : i32
    %c0_i32_0 = arith.constant 0 : i32
    %c0_i32_1 = arith.constant 0 : i32
    return %c0_i32, %c0_i32_0 : i32, i32
  }
  func.func @transform_9(%arg0: i32) -> (i32, i32) {
    %c0_i32 = arith.constant 0 : i32
    %c0_i32_0 = arith.constant 0 : i32
    return %arg0, %c0_i32 : i32, i32
  }
}

module attributes {stable_mosaic.version = 11 : i64} {
  func.func @ideal_mlp_kernel(%arg0: i32, %arg1: memref<8x128xbf16, #tpu.memory_space<vmem>>, %arg2: memref<128x128xbf16, #tpu.memory_space<vmem>>, %arg3: memref<1x128xf32, #tpu.memory_space<vmem>>, %arg4: memref<128x128xbf16, #tpu.memory_space<vmem>>, %arg5: memref<1x128xf32, #tpu.memory_space<vmem>>, %arg6: memref<128x128xbf16, #tpu.memory_space<vmem>>, %arg7: memref<1x128xf32, #tpu.memory_space<vmem>>, %arg8: memref<128x128xbf16, #tpu.memory_space<vmem>>, %arg9: memref<1x128xf32, #tpu.memory_space<vmem>>, %arg10: memref<8x128xf32, #tpu.memory_space<vmem>>) attributes {dimension_semantics = [#tpu.dimension_semantics<parallel>], iteration_bounds = array<i64: 1>, scalar_prefetch = 0 : i64, scratch_operands = 0 : i64, tpu.core_type = #tpu.core_type<tc>, window_params = [{transform_indices = @transform_0, window_bounds = array<i64: 8, 128>}, {pipeline_mode = #tpu.pipeline_mode<synchronous>, transform_indices = @transform_1, window_bounds = array<i64: 128, 128>}, {pipeline_mode = #tpu.pipeline_mode<synchronous>, transform_indices = @transform_2, window_bounds = array<i64: 1, 128>}, {pipeline_mode = #tpu.pipeline_mode<synchronous>, transform_indices = @transform_3, window_bounds = array<i64: 128, 128>}, {pipeline_mode = #tpu.pipeline_mode<synchronous>, transform_indices = @transform_4, window_bounds = array<i64: 1, 128>}, {pipeline_mode = #tpu.pipeline_mode<synchronous>, transform_indices = @transform_5, window_bounds = array<i64: 128, 128>}, {pipeline_mode = #tpu.pipeline_mode<synchronous>, transform_indices = @transform_6, window_bounds = array<i64: 1, 128>}, {pipeline_mode = #tpu.pipeline_mode<synchronous>, transform_indices = @transform_7, window_bounds = array<i64: 128, 128>}, {pipeline_mode = #tpu.pipeline_mode<synchronous>, transform_indices = @transform_8, window_bounds = array<i64: 1, 128>}, {transform_indices = @transform_9, window_bounds = array<i64: 8, 128>}]} {
    %c0 = arith.constant 0 : index
    %c0_0 = arith.constant 0 : index
    %0 = vector.load %arg1[%c0, %c0_0] : memref<8x128xbf16, #tpu.memory_space<vmem>>, vector<8x128xbf16>
    %c0_1 = arith.constant 0 : index
    %c0_2 = arith.constant 0 : index
    %1 = vector.load %arg2[%c0_1, %c0_2] : memref<128x128xbf16, #tpu.memory_space<vmem>>, vector<128x128xbf16>
    %cst = arith.constant dense<0.000000e+00> : vector<8x128xf32>
    %2 = tpu.matmul %0, %1, %cst {dimension_numbers = #tpu.dot_dimension_numbers<[1], [0], [0], [1], [0, 0, 1, 1], [], []>} : vector<8x128xbf16>, vector<128x128xbf16>, vector<8x128xf32> -> vector<8x128xf32>
    %c0_3 = arith.constant 0 : index
    %c0_4 = arith.constant 0 : index
    %3 = vector.load %arg3[%c0_3, %c0_4] : memref<1x128xf32, #tpu.memory_space<vmem>>, vector<1x128xf32>
    %4 = vector.broadcast %3 : vector<1x128xf32> to vector<8x128xf32>
    %5 = arith.addf %2, %4 : vector<8x128xf32>
    %cst_5 = arith.constant 2.000000e+01 : f32
    %6 = vector.broadcast %cst_5 : f32 to vector<8x128xf32>
    %7 = arith.minimumf %5, %6 : vector<8x128xf32>
    %8 = math.exp %7 : vector<8x128xf32>
    %cst_6 = arith.constant 2.000000e+00 : f32
    %9 = vector.broadcast %cst_6 : f32 to vector<8x128xf32>
    %10 = arith.addf %8, %9 : vector<8x128xf32>
    %11 = arith.mulf %8, %10 : vector<8x128xf32>
    %12 = arith.mulf %5, %11 : vector<8x128xf32>
    %cst_7 = arith.constant 2.000000e+00 : f32
    %13 = vector.broadcast %cst_7 : f32 to vector<8x128xf32>
    %14 = arith.addf %11, %13 : vector<8x128xf32>
    %15 = tpu.reciprocal %14 {approx = true} : vector<8x128xf32> -> vector<8x128xf32>
    %16 = arith.mulf %12, %15 : vector<8x128xf32>
    %cst_8 = arith.constant 2.000000e+01 : f32
    %17 = vector.broadcast %cst_8 : f32 to vector<8x128xf32>
    %18 = arith.cmpf ogt, %5, %17 : vector<8x128xf32>
    %19 = arith.select %18, %5, %16 : vector<8x128xi1>, vector<8x128xf32>
    %20 = arith.truncf %19 : vector<8x128xf32> to vector<8x128xbf16>
    %c0_9 = arith.constant 0 : index
    %c0_10 = arith.constant 0 : index
    %21 = vector.load %arg4[%c0_9, %c0_10] : memref<128x128xbf16, #tpu.memory_space<vmem>>, vector<128x128xbf16>
    %cst_11 = arith.constant dense<0.000000e+00> : vector<8x128xf32>
    %22 = tpu.matmul %20, %21, %cst_11 {dimension_numbers = #tpu.dot_dimension_numbers<[1], [0], [0], [1], [0, 0, 1, 1], [], []>} : vector<8x128xbf16>, vector<128x128xbf16>, vector<8x128xf32> -> vector<8x128xf32>
    %c0_12 = arith.constant 0 : index
    %c0_13 = arith.constant 0 : index
    %23 = vector.load %arg5[%c0_12, %c0_13] : memref<1x128xf32, #tpu.memory_space<vmem>>, vector<1x128xf32>
    %24 = vector.broadcast %23 : vector<1x128xf32> to vector<8x128xf32>
    %25 = arith.addf %22, %24 : vector<8x128xf32>
    %cst_14 = arith.constant 2.000000e+01 : f32
    %26 = vector.broadcast %cst_14 : f32 to vector<8x128xf32>
    %27 = arith.minimumf %25, %26 : vector<8x128xf32>
    %28 = math.exp %27 : vector<8x128xf32>
    %cst_15 = arith.constant 2.000000e+00 : f32
    %29 = vector.broadcast %cst_15 : f32 to vector<8x128xf32>
    %30 = arith.addf %28, %29 : vector<8x128xf32>
    %31 = arith.mulf %28, %30 : vector<8x128xf32>
    %32 = arith.mulf %25, %31 : vector<8x128xf32>
    %cst_16 = arith.constant 2.000000e+00 : f32
    %33 = vector.broadcast %cst_16 : f32 to vector<8x128xf32>
    %34 = arith.addf %31, %33 : vector<8x128xf32>
    %35 = tpu.reciprocal %34 {approx = true} : vector<8x128xf32> -> vector<8x128xf32>
    %36 = arith.mulf %32, %35 : vector<8x128xf32>
    %cst_17 = arith.constant 2.000000e+01 : f32
    %37 = vector.broadcast %cst_17 : f32 to vector<8x128xf32>
    %38 = arith.cmpf ogt, %25, %37 : vector<8x128xf32>
    %39 = arith.select %38, %25, %36 : vector<8x128xi1>, vector<8x128xf32>
    %40 = arith.truncf %39 : vector<8x128xf32> to vector<8x128xbf16>
    %c0_18 = arith.constant 0 : index
    %c0_19 = arith.constant 0 : index
    %41 = vector.load %arg6[%c0_18, %c0_19] : memref<128x128xbf16, #tpu.memory_space<vmem>>, vector<128x128xbf16>
    %cst_20 = arith.constant dense<0.000000e+00> : vector<8x128xf32>
    %42 = tpu.matmul %40, %41, %cst_20 {dimension_numbers = #tpu.dot_dimension_numbers<[1], [0], [0], [1], [0, 0, 1, 1], [], []>} : vector<8x128xbf16>, vector<128x128xbf16>, vector<8x128xf32> -> vector<8x128xf32>
    %c0_21 = arith.constant 0 : index
    %c0_22 = arith.constant 0 : index
    %43 = vector.load %arg7[%c0_21, %c0_22] : memref<1x128xf32, #tpu.memory_space<vmem>>, vector<1x128xf32>
    %44 = vector.broadcast %43 : vector<1x128xf32> to vector<8x128xf32>
    %45 = arith.addf %42, %44 : vector<8x128xf32>
    %46 = arith.truncf %45 : vector<8x128xf32> to vector<8x128xbf16>
    %c0_23 = arith.constant 0 : index
    %c0_24 = arith.constant 0 : index
    %47 = vector.load %arg8[%c0_23, %c0_24] : memref<128x128xbf16, #tpu.memory_space<vmem>>, vector<128x128xbf16>
    %cst_25 = arith.constant dense<0.000000e+00> : vector<8x128xf32>
    %48 = tpu.matmul %46, %47, %cst_25 {dimension_numbers = #tpu.dot_dimension_numbers<[1], [0], [0], [1], [0, 0, 1, 1], [], []>} : vector<8x128xbf16>, vector<128x128xbf16>, vector<8x128xf32> -> vector<8x128xf32>
    %c0_26 = arith.constant 0 : index
    %c0_27 = arith.constant 0 : index
    %49 = vector.load %arg9[%c0_26, %c0_27] : memref<1x128xf32, #tpu.memory_space<vmem>>, vector<1x128xf32>
    %50 = vector.broadcast %49 : vector<1x128xf32> to vector<8x128xf32>
    %51 = arith.addf %48, %50 : vector<8x128xf32>
    %52 = tpu.iota {dimensions = array<i32: 1>} : vector<8x128xi32>
    %c16_i32 = arith.constant 16 : i32
    %53 = vector.broadcast %c16_i32 : i32 to vector<8x128xi32>
    %54 = arith.cmpi slt, %52, %53 : vector<8x128xi32>
    %cst_28 = arith.constant -1.000000e+30 : f32
    %55 = vector.broadcast %cst_28 : f32 to vector<8x128xf32>
    %56 = arith.select %54, %51, %55 : vector<8x128xi1>, vector<8x128xf32>
    %cst_29 = arith.constant dense<0xFF800000> : vector<8xf32>
    %57 = vector.multi_reduction <maximumf>, %56, %cst_29 [1] : vector<8x128xf32> to vector<8xf32>
    %58 = vector.shape_cast %57 : vector<8xf32> to vector<8x1xf32>
    %59 = vector.broadcast %58 : vector<8x1xf32> to vector<8x128xf32>
    %60 = arith.subf %56, %59 : vector<8x128xf32>
    %61 = math.exp %60 : vector<8x128xf32>
    %cst_30 = arith.constant dense<0.000000e+00> : vector<8xf32>
    %62 = vector.multi_reduction <add>, %61, %cst_30 [1] : vector<8x128xf32> to vector<8xf32>
    %63 = vector.shape_cast %62 : vector<8xf32> to vector<8x1xf32>
    %64 = math.log %63 : vector<8x1xf32>
    %65 = vector.broadcast %64 : vector<8x1xf32> to vector<8x128xf32>
    %66 = arith.subf %60, %65 : vector<8x128xf32>
    %c0_31 = arith.constant 0 : index
    %c0_32 = arith.constant 0 : index
    %67 = vector.load %arg10[%c0_31, %c0_32] : memref<8x128xf32, #tpu.memory_space<vmem>>, vector<8x128xf32>
    tpu.vector_store %arg10[%c0_31, %c0_32], %66 {strides = array<i32>} : memref<8x128xf32, #tpu.memory_space<vmem>>, vector<8x128xf32>,
    return
  }
  func.func @transform_0(%arg0: i32) -> (i32, i32) {
    %c0_i32 = arith.constant 0 : i32
    %c0_i32_0 = arith.constant 0 : i32
    return %arg0, %c0_i32 : i32, i32
  }
  func.func @transform_1(%arg0: i32) -> (i32, i32) {
    %c0_i32 = arith.constant 0 : i32
    %c0_i32_0 = arith.constant 0 : i32
    %c0_i32_1 = arith.constant 0 : i32
    return %c0_i32, %c0_i32_0 : i32, i32
  }
  func.func @transform_2(%arg0: i32) -> (i32, i32) {
    %c0_i32 = arith.constant 0 : i32
    %c0_i32_0 = arith.constant 0 : i32
    %c0_i32_1 = arith.constant 0 : i32
    return %c0_i32, %c0_i32_0 : i32, i32
  }
  func.func @transform_3(%arg0: i32) -> (i32, i32) {
    %c0_i32 = arith.constant 0 : i32
    %c0_i32_0 = arith.constant 0 : i32
    %c0_i32_1 = arith.constant 0 : i32
    return %c0_i32, %c0_i32_0 : i32, i32
  }
  func.func @transform_4(%arg0: i32) -> (i32, i32) {
    %c0_i32 = arith.constant 0 : i32
    %c0_i32_0 = arith.constant 0 : i32
    %c0_i32_1 = arith.constant 0 : i32
    return %c0_i32, %c0_i32_0 : i32, i32
  }
  func.func @transform_5(%arg0: i32) -> (i32, i32) {
    %c0_i32 = arith.constant 0 : i32
    %c0_i32_0 = arith.constant 0 : i32
    %c0_i32_1 = arith.constant 0 : i32
    return %c0_i32, %c0_i32_0 : i32, i32
  }
  func.func @transform_6(%arg0: i32) -> (i32, i32) {
    %c0_i32 = arith.constant 0 : i32
    %c0_i32_0 = arith.constant 0 : i32
    %c0_i32_1 = arith.constant 0 : i32
    return %c0_i32, %c0_i32_0 : i32, i32
  }
  func.func @transform_7(%arg0: i32) -> (i32, i32) {
    %c0_i32 = arith.constant 0 : i32
    %c0_i32_0 = arith.constant 0 : i32
    %c0_i32_1 = arith.constant 0 : i32
    return %c0_i32, %c0_i32_0 : i32, i32
  }
  func.func @transform_8(%arg0: i32) -> (i32, i32) {
    %c0_i32 = arith.constant 0 : i32
    %c0_i32_0 = arith.constant 0 : i32
    %c0_i32_1 = arith.constant 0 : i32
    return %c0_i32, %c0_i32_0 : i32, i32
  }
  func.func @transform_9(%arg0: i32) -> (i32, i32) {
    %c0_i32 = arith.constant 0 : i32
    %c0_i32_0 = arith.constant 0 : i32
    return %arg0, %c0_i32 : i32, i32
  }
}

</mosaic_0001>

<llo_original>
// kernel: tpu_custom_call.1
$region0: #{tpu_custom_call.1}
  #allocation0 [shape = 'u32[]', space=smem, size = 0x4, offset = 0x4, fixed_abs, tag = 'smem constant byte address 0x4 - core index']
  #allocation1 [shape = 'u32[144,128]{1,0:T(1,128)}', space=vmem, size = 0x12000, scoped, tag = 'internal scratch']
  %s0 = inlined_call_operand.hbm [shape: bf16[8,128], index: 0, kind: input, shape index: {}]
  %s1 = inlined_call_operand.hbm [shape: bf16[128,128], index: 1, kind: input, shape index: {}]
  %s2 = inlined_call_operand.vmem [shape: f32[1,128], index: 2, kind: input, shape index: {}]
  %s3 = inlined_call_operand.hbm [shape: bf16[128,128], index: 3, kind: input, shape index: {}]
  %s4 = inlined_call_operand.vmem [shape: f32[1,128], index: 4, kind: input, shape index: {}]
  %s5 = inlined_call_operand.hbm [shape: bf16[128,128], index: 5, kind: input, shape index: {}]
  %s6 = inlined_call_operand.vmem [shape: f32[1,128], index: 6, kind: input, shape index: {}]
  %s7 = inlined_call_operand.hbm [shape: bf16[128,128], index: 7, kind: input, shape index: {}]
  %s8 = inlined_call_operand.vmem [shape: f32[1,128], index: 8, kind: input, shape index: {}]
  %s9 = inlined_call_operand.hbm [shape: f32[8,128], index: 9, kind: output, shape index: {}]
  %s10 = sld [smem:[#allocation0]]
  $region66: #{tpu_custom_call.1} parent=0
    _
  %s12 = ssub.s32 1, %s10
  %s13 = scalar_select 0, %s12, %s10
  $region1: #{tpu_custom_call.1} parent=0
    #allocation2 [shape = 'u8[2048]{0}', space=vmem, size = 0x800, scoped, tag = 'input window, operand 0, single buffered']
    #allocation3 [shape = 's32[1]{0}', space=sflag, size = 0x4, scoped, tag = 'scoped memory for tpu_custom_call.1']
    #allocation4 [shape = 's32[1]{0}', space=sflag, size = 0x4, scoped, tag = 'scoped memory for tpu_custom_call.1']
    #allocation5 [shape = 'u8[32768]{0}', space=vmem, size = 0x8000, scoped, tag = 'input window, operand 1, single buffered']
    #allocation6 [shape = 's32[1]{0}', space=sflag, size = 0x4, scoped, tag = 'scoped memory for tpu_custom_call.1']
    #allocation7 [shape = 'u8[32768]{0}', space=vmem, size = 0x8000, scoped, tag = 'input window, operand 3, single buffered']
    #allocation8 [shape = 'u8[32768]{0}', space=vmem, size = 0x8000, scoped, tag = 'input window, operand 5, single buffered']
    #allocation9 [shape = 's32[1]{0}', space=sflag, size = 0x4, scoped, tag = 'scoped memory for tpu_custom_call.1']
    #allocation10 [shape = 'u8[32768]{0}', space=vmem, size = 0x8000, scoped, tag = 'input window, operand 7, single buffered']
    #allocation11 [shape = 'u8[4096]{0}', space=vmem, size = 0x1000, scoped, tag = 'output window, operand 0, single buffered']
    %14 = vsyncpa [#allocation3], 0
    %15 = vsyncpa [#allocation6], 0
    %16 = vsyncpa [#allocation9], 0
    %17 = vsyncpa [#allocation4], 0
    // Predicated region
    $region2: #{tpu_custom_call.1} parent=1 // pred_check
      _
    $region3: #{tpu_custom_call.1} parent=1 // pred_check_branch
      %19 = sbr.rel (0) target = $region5
    $region4: #{tpu_custom_call.1} parent=1 // pred_region
      %s21 = ssub.s32 64, 64
      %22 = vsyncadd [#allocation3], %s21
      %s24 = sshll.u32 [#allocation2], 4
      %s25 = int_to_ptr.vmem [resolvable:$true] %s24
      %27 = dma.hbm_to_vmem [thread:$0]  %s0, 64, %s25, [#allocation3]
    $region5: #{tpu_custom_call.1} parent=1 // pred_fallthru
      _
    // Predicated region
    $region6: #{tpu_custom_call.1} parent=1 // pred_check
      _
    $region7: #{tpu_custom_call.1} parent=1 // pred_check_branch
      %29 = sbr.rel (0) target = $region9
    $region8: #{tpu_custom_call.1} parent=1 // pred_region
      %s31 = ssub.s32 1024, 1024
      %32 = vsyncadd [#allocation6], %s31
      %s33 = sshll.u32 [#allocation5], 4
      %s34 = int_to_ptr.vmem [resolvable:$true] %s33
      %39 = dma.hbm_to_vmem [thread:$0]  %s1, 1024, %s34, [#allocation6], 64, 64, 4
    $region9: #{tpu_custom_call.1} parent=1 // pred_fallthru
      _
    // Predicated region
    $region10: #{tpu_custom_call.1} parent=1 // pred_check
      _
    $region11: #{tpu_custom_call.1} parent=1 // pred_check_branch
      %41 = sbr.rel (0) target = $region13
    $region12: #{tpu_custom_call.1} parent=1 // pred_region
      _
    $region13: #{tpu_custom_call.1} parent=1 // pred_fallthru
      _
    // Predicated region
    $region14: #{tpu_custom_call.1} parent=1 // pred_check
      _
    $region15: #{tpu_custom_call.1} parent=1 // pred_check_branch
      %43 = sbr.rel (0) target = $region17
    $region16: #{tpu_custom_call.1} parent=1 // pred_region
      %s45 = ssub.s32 1024, 1024
      %46 = vsyncadd [#allocation6], %s45
      %s47 = sshll.u32 [#allocation7], 4
      %s48 = int_to_ptr.vmem [resolvable:$true] %s47
      %53 = dma.hbm_to_vmem [thread:$0]  %s3, 1024, %s48, [#allocation6], 64, 64, 4
    $region17: #{tpu_custom_call.1} parent=1 // pred_fallthru
      _
    // Predicated region
    $region18: #{tpu_custom_call.1} parent=1 // pred_check
      _
    $region19: #{tpu_custom_call.1} parent=1 // pred_check_branch
      %55 = sbr.rel (0) target = $region21
    $region20: #{tpu_custom_call.1} parent=1 // pred_region
      _
    $region21: #{tpu_custom_call.1} parent=1 // pred_fallthru
      _
    // Predicated region
    $region22: #{tpu_custom_call.1} parent=1 // pred_check
      _
    $region23: #{tpu_custom_call.1} parent=1 // pred_check_branch
      %57 = sbr.rel (0) target = $region25
    $region24: #{tpu_custom_call.1} parent=1 // pred_region
      %s59 = ssub.s32 1024, 1024
      %60 = vsyncadd [#allocation9], %s59
      %s61 = sshll.u32 [#allocation8], 4
      %s62 = int_to_ptr.vmem [resolvable:$true] %s61
      %67 = dma.hbm_to_vmem [thread:$0]  %s5, 1024, %s62, [#allocation9], 64, 64, 4
    $region25: #{tpu_custom_call.1} parent=1 // pred_fallthru
      _
    // Predicated region
    $region26: #{tpu_custom_call.1} parent=1 // pred_check
      _
    $region27: #{tpu_custom_call.1} parent=1 // pred_check_branch
      %69 = sbr.rel (0) target = $region29
    $region28: #{tpu_custom_call.1} parent=1 // pred_region
      _
    $region29: #{tpu_custom_call.1} parent=1 // pred_fallthru
      _
    // Predicated region
    $region30: #{tpu_custom_call.1} parent=1 // pred_check
      _
    $region31: #{tpu_custom_call.1} parent=1 // pred_check_branch
      %71 = sbr.rel (0) target = $region33
    $region32: #{tpu_custom_call.1} parent=1 // pred_region
      %s73 = ssub.s32 1024, 1024
      %74 = vsyncadd [#allocation9], %s73
      %s75 = sshll.u32 [#allocation10], 4
      %s76 = int_to_ptr.vmem [resolvable:$true] %s75
      %81 = dma.hbm_to_vmem [thread:$0]  %s7, 1024, %s76, [#allocation9], 64, 64, 4
    $region33: #{tpu_custom_call.1} parent=1 // pred_fallthru
      _
    // Predicated region
    $region34: #{tpu_custom_call.1} parent=1 // pred_check
      _
    $region35: #{tpu_custom_call.1} parent=1 // pred_check_branch
      %83 = sbr.rel (0) target = $region37
    $region36: #{tpu_custom_call.1} parent=1 // pred_region
      _
    $region37: #{tpu_custom_call.1} parent=1 // pred_fallthru
      _
    // Predicated region
    $region38: #{tpu_custom_call.1} parent=1 // pred_check
      _
    $region39: #{tpu_custom_call.1} parent=1 // pred_check_branch
      %85 = sbr.rel (0) target = $region41
    $region40: #{tpu_custom_call.1} parent=1 // pred_region
      %86 = dma.done [#allocation3], 64
    $region41: #{tpu_custom_call.1} parent=1 // pred_fallthru
      _
    // Predicated region
    $region42: #{tpu_custom_call.1} parent=1 // pred_check
      _
    $region43: #{tpu_custom_call.1} parent=1 // pred_check_branch
      %88 = sbr.rel (0) target = $region45
    $region44: #{tpu_custom_call.1} parent=1 // pred_region
      %89 = dma.done [#allocation6], 1024
    $region45: #{tpu_custom_call.1} parent=1 // pred_fallthru
      _
    // Predicated region
    $region46: #{tpu_custom_call.1} parent=1 // pred_check
      _
    $region47: #{tpu_custom_call.1} parent=1 // pred_check_branch
      %91 = sbr.rel (0) target = $region49
    $region48: #{tpu_custom_call.1} parent=1 // pred_region
      %92 = dma.done [#allocation6], 1024
    $region49: #{tpu_custom_call.1} parent=1 // pred_fallthru
      _
    // Predicated region
    $region50: #{tpu_custom_call.1} parent=1 // pred_check
      _
    $region51: #{tpu_custom_call.1} parent=1 // pred_check_branch
      %94 = sbr.rel (0) target = $region53
    $region52: #{tpu_custom_call.1} parent=1 // pred_region
      %95 = dma.done [#allocation9], 1024
    $region53: #{tpu_custom_call.1} parent=1 // pred_fallthru
      _
    // Predicated region
    $region54: #{tpu_custom_call.1} parent=1 // pred_check
      _
    $region55: #{tpu_custom_call.1} parent=1 // pred_check_branch
      %97 = sbr.rel (0) target = $region57
    $region56: #{tpu_custom_call.1} parent=1 // pred_region
      %98 = dma.done [#allocation9], 1024
    $region57: #{tpu_custom_call.1} parent=1 // pred_fallthru
      _
    %v100 = vld [vmem:[#allocation2] sm:$0xf]
    %v101 = vld [vmem:[#allocation5] sm:$0xf]
    %v102 = vld [vmem:[#allocation5 + $0x4] sm:$0xf]
    %v103 = vld [vmem:[#allocation5 + $0x8] sm:$0xf]
    %v104 = vld [vmem:[#allocation5 + $0xc] sm:$0xf]
    %v105 = vld [vmem:[#allocation5 + $0x10] sm:$0xf]
    %v106 = vld [vmem:[#allocation5 + $0x14] sm:$0xf]
    %v107 = vld [vmem:[#allocation5 + $0x18] sm:$0xf]
    %v108 = vld [vmem:[#allocation5 + $0x1c] sm:$0xf]
    %v109 = vld [vmem:[#allocation5 + $0x20] sm:$0xf]
    %v110 = vld [vmem:[#allocation5 + $0x24] sm:$0xf]
    %v111 = vld [vmem:[#allocation5 + $0x28] sm:$0xf]
    %v112 = vld [vmem:[#allocation5 + $0x2c] sm:$0xf]
    %v113 = vld [vmem:[#allocation5 + $0x30] sm:$0xf]
    %v114 = vld [vmem:[#allocation5 + $0x34] sm:$0xf]
    %v115 = vld [vmem:[#allocation5 + $0x38] sm:$0xf]
    %v116 = vld [vmem:[#allocation5 + $0x3c] sm:$0xf]
    %v117 = vld [vmem:[%s2] sm:$0x1]
    %v119 = vlaneseq
    %v120 = vshrl.u32 %v119, 7
    %v121 = vsub.s32 0, %v120
    %v122 = vrot.slane %v117, %v121
    %v140 = vunpack.c.l.b16 %v101
    %v141 = vunpack.c.l.b16 %v102
    %v142 = vunpack.c.l.b16 %v103
    %v143 = vunpack.c.l.b16 %v104
    %v144 = vunpack.c.l.b16 %v105
    %v145 = vunpack.c.l.b16 %v106
    %v146 = vunpack.c.l.b16 %v107
    %v147 = vunpack.c.l.b16 %v108
    %v148 = vunpack.c.l.b16 %v109
    %v149 = vunpack.c.l.b16 %v110
    %v150 = vunpack.c.l.b16 %v111
    %v151 = vunpack.c.l.b16 %v112
    %v152 = vunpack.c.l.b16 %v113
    %v153 = vunpack.c.l.b16 %v114
    %v154 = vunpack.c.l.b16 %v115
    %v155 = vunpack.c.l.b16 %v116
    %v156 = vpack.c.b16 %v141, %v140
    %v157 = vpack.c.b16 %v143, %v142
    %v158 = vpack.c.b16 %v145, %v144
    %v159 = vpack.c.b16 %v147, %v146
    %v160 = vpack.c.b16 %v149, %v148
    %v161 = vpack.c.b16 %v151, %v150
    %v162 = vpack.c.b16 %v153, %v152
    %v163 = vpack.c.b16 %v155, %v154
    %172 = vmatprep.subr.bf16.mxu0 0
    %173 = vmatpush1.bf16.msra.mxu0 %v156
    %174 = vmatprep.subr.bf16.mxu0 0
    %175 = vmatpush1.bf16.msra.mxu0 %v157
    %176 = vmatprep.subr.bf16.mxu0 0
    %177 = vmatpush1.bf16.msra.mxu0 %v158
    %178 = vmatprep.subr.bf16.mxu0 0
    %179 = vmatpush1.bf16.msra.mxu0 %v159
    %180 = vmatprep.subr.bf16.mxu0 0
    %181 = vmatpush1.bf16.msra.mxu0 %v160
    %182 = vmatprep.subr.bf16.mxu0 0
    %183 = vmatpush1.bf16.msra.mxu0 %v161
    %184 = vmatprep.subr.bf16.mxu0 0
    %185 = vmatpush1.bf16.msra.mxu0 %v162
    %186 = vmatprep.subr.bf16.mxu0 0
    %187 = vmatpush1.bf16.msra.mxu0 %v163
    %188 = vmatprep.subr.bf16.mxu0 0
    %189 = vmatpush1.bf16.msra.mxu0 0
    %190 = vmatprep.subr.bf16.mxu0 0
    %191 = vmatpush1.bf16.msra.mxu0 0
    %192 = vmatprep.subr.bf16.mxu0 0
    %193 = vmatpush1.bf16.msra.mxu0 0
    %194 = vmatprep.subr.bf16.mxu0 0
    %195 = vmatpush1.bf16.msra.mxu0 0
    %196 = vmatprep.subr.bf16.mxu0 0
    %197 = vmatpush1.bf16.msra.mxu0 0
    %198 = vmatprep.subr.bf16.mxu0 0
    %199 = vmatpush1.bf16.msra.mxu0 0
    %200 = vmatprep.subr.bf16.mxu0 0
    %201 = vmatpush1.bf16.msra.mxu0 0
    %202 = vmatprep.subr.bf16.mxu0 0
    %203 = vmatpush1.bf16.msra.mxu0 0
    %204 = vmatprep.mubr.bf16.mxu0 0
    %205 = vmatmul.mubr.bf16.gmra.mrb[0].mxu0 %v100
    %v206 = vpop.f32.mrb[0].mxu0
    %v207 = vadd.f32 %v122, %v206
    %v208 = vpop.f32.mrb[0].mxu0
    %v209 = vpop.f32.mrb[0].mxu0
    %v210 = vpop.f32.mrb[0].mxu0
    %211 = vdwg.mxu0
    %v212 = vmin.f32 %v207, 20.0
    %v213 = vmul.f32 %v212, 1.442695
    %v214 = vpow.pop %v213
    %v215 = vadd.f32 %v214, 2.0
    %v216 = vmul.f32 %v214, %v215
    %v217 = vmul.f32 %v207, %v216
    %v218 = vadd.f32 %v216, 2.0
    %v219 = vrcp.pop %v218
    %v220 = vmul.f32 %v217, %v219
    %vm221 = vcmp.gt.f32.partialorder %v207, 20.0
    %v222 = vsel %vm221, %v207, %v220
    %v223 = vpack.c.bf16 %v222, %v222
    %v224 = vld [vmem:[#allocation7] sm:$0xf]
    %v225 = vld [vmem:[#allocation7 + $0x4] sm:$0xf]
    %v226 = vld [vmem:[#allocation7 + $0x8] sm:$0xf]
    %v227 = vld [vmem:[#allocation7 + $0xc] sm:$0xf]
    %v228 = vld [vmem:[#allocation7 + $0x10] sm:$0xf]
    %v229 = vld [vmem:[#allocation7 + $0x14] sm:$0xf]
    %v230 = vld [vmem:[#allocation7 + $0x18] sm:$0xf]
    %v231 = vld [vmem:[#allocation7 + $0x1c] sm:$0xf]
    %v232 = vld [vmem:[#allocation7 + $0x20] sm:$0xf]
    %v233 = vld [vmem:[#allocation7 + $0x24] sm:$0xf]
    %v234 = vld [vmem:[#allocation7 + $0x28] sm:$0xf]
    %v235 = vld [vmem:[#allocation7 + $0x2c] sm:$0xf]
    %v236 = vld [vmem:[#allocation7 + $0x30] sm:$0xf]
    %v237 = vld [vmem:[#allocation7 + $0x34] sm:$0xf]
    %v238 = vld [vmem:[#allocation7 + $0x38] sm:$0xf]
    %v239 = vld [vmem:[#allocation7 + $0x3c] sm:$0xf]
    %v240 = vld [vmem:[%s4] sm:$0x1]
    %v242 = vlaneseq
    %v243 = vshrl.u32 %v242, 7
    %v244 = vsub.s32 0, %v243
    %v245 = vrot.slane %v240, %v244
    %v263 = vunpack.c.l.b16 %v224
    %v264 = vunpack.c.l.b16 %v225
    %v265 = vunpack.c.l.b16 %v226
    %v266 = vunpack.c.l.b16 %v227
    %v267 = vunpack.c.l.b16 %v228
    %v268 = vunpack.c.l.b16 %v229
    %v269 = vunpack.c.l.b16 %v230
    %v270 = vunpack.c.l.b16 %v231
    %v271 = vunpack.c.l.b16 %v232
    %v272 = vunpack.c.l.b16 %v233
    %v273 = vunpack.c.l.b16 %v234
    %v274 = vunpack.c.l.b16 %v235
    %v275 = vunpack.c.l.b16 %v236
    %v276 = vunpack.c.l.b16 %v237
    %v277 = vunpack.c.l.b16 %v238
    %v278 = vunpack.c.l.b16 %v239
    %v279 = vpack.c.b16 %v264, %v263
    %v280 = vpack.c.b16 %v266, %v265
    %v281 = vpack.c.b16 %v268, %v267
    %v282 = vpack.c.b16 %v270, %v269
    %v283 = vpack.c.b16 %v272, %v271
    %v284 = vpack.c.b16 %v274, %v273
    %v285 = vpack.c.b16 %v276, %v275
    %v286 = vpack.c.b16 %v278, %v277
    %295 = vmatprep.subr.bf16.mxu0 0
    %296 = vmatpush1.bf16.msra.mxu0 %v279
    %297 = vmatprep.subr.bf16.mxu0 0
    %298 = vmatpush1.bf16.msra.mxu0 %v280
    %299 = vmatprep.subr.bf16.mxu0 0
    %300 = vmatpush1.bf16.msra.mxu0 %v281
    %301 = vmatprep.subr.bf16.mxu0 0
    %302 = vmatpush1.bf16.msra.mxu0 %v282
    %303 = vmatprep.subr.bf16.mxu0 0
    %304 = vmatpush1.bf16.msra.mxu0 %v283
    %305 = vmatprep.subr.bf16.mxu0 0
    %306 = vmatpush1.bf16.msra.mxu0 %v284
    %307 = vmatprep.subr.bf16.mxu0 0
    %308 = vmatpush1.bf16.msra.mxu0 %v285
    %309 = vmatprep.subr.bf16.mxu0 0
    %310 = vmatpush1.bf16.msra.mxu0 %v286
    %311 = vmatprep.subr.bf16.mxu0 0
    %312 = vmatpush1.bf16.msra.mxu0 0
    %313 = vmatprep.subr.bf16.mxu0 0
    %314 = vmatpush1.bf16.msra.mxu0 0
    %315 = vmatprep.subr.bf16.mxu0 0
    %316 = vmatpush1.bf16.msra.mxu0 0
    %317 = vmatprep.subr.bf16.mxu0 0
    %318 = vmatpush1.bf16.msra.mxu0 0
    %319 = vmatprep.subr.bf16.mxu0 0
    %320 = vmatpush1.bf16.msra.mxu0 0
    %321 = vmatprep.subr.bf16.mxu0 0
    %322 = vmatpush1.bf16.msra.mxu0 0
    %323 = vmatprep.subr.bf16.mxu0 0
    %324 = vmatpush1.bf16.msra.mxu0 0
    %325 = vmatprep.subr.bf16.mxu0 0
    %326 = vmatpush1.bf16.msra.mxu0 0
    %327 = vmatprep.mubr.bf16.mxu0 0
    %328 = vmatmul.mubr.bf16.gmra.mrb[0].mxu0 %v223
    %v329 = vpop.f32.mrb[0].mxu0
    %v330 = vadd.f32 %v245, %v329
    %v331 = vpop.f32.mrb[0].mxu0
    %v332 = vpop.f32.mrb[0].mxu0
    %v333 = vpop.f32.mrb[0].mxu0
    %334 = vdwg.mxu0
    %v335 = vmin.f32 %v330, 20.0
    %v336 = vmul.f32 %v335, 1.442695
    %v337 = vpow.pop %v336
    %v338 = vadd.f32 %v337, 2.0
    %v339 = vmul.f32 %v337, %v338
    %v340 = vmul.f32 %v330, %v339
    %v341 = vadd.f32 %v339, 2.0
    %v342 = vrcp.pop %v341
    %v343 = vmul.f32 %v340, %v342
    %vm344 = vcmp.gt.f32.partialorder %v330, 20.0
    %v345 = vsel %vm344, %v330, %v343
    %v346 = vpack.c.bf16 %v345, %v345
    %v347 = vld [vmem:[#allocation8] sm:$0xf]
    %v348 = vld [vmem:[#allocation8 + $0x4] sm:$0xf]
    %v349 = vld [vmem:[#allocation8 + $0x8] sm:$0xf]
    %v350 = vld [vmem:[#allocation8 + $0xc] sm:$0xf]
    %v351 = vld [vmem:[#allocation8 + $0x10] sm:$0xf]
    %v352 = vld [vmem:[#allocation8 + $0x14] sm:$0xf]
    %v353 = vld [vmem:[#allocation8 + $0x18] sm:$0xf]
    %v354 = vld [vmem:[#allocation8 + $0x1c] sm:$0xf]
    %v355 = vld [vmem:[#allocation8 + $0x20] sm:$0xf]
    %v356 = vld [vmem:[#allocation8 + $0x24] sm:$0xf]
    %v357 = vld [vmem:[#allocation8 + $0x28] sm:$0xf]
    %v358 = vld [vmem:[#allocation8 + $0x2c] sm:$0xf]
    %v359 = vld [vmem:[#allocation8 + $0x30] sm:$0xf]
    %v360 = vld [vmem:[#allocation8 + $0x34] sm:$0xf]
    %v361 = vld [vmem:[#allocation8 + $0x38] sm:$0xf]
    %v362 = vld [vmem:[#allocation8 + $0x3c] sm:$0xf]
    %v363 = vld [vmem:[%s6] sm:$0x1]
    %v365 = vlaneseq
    %v366 = vshrl.u32 %v365, 7
    %v367 = vsub.s32 0, %v366
    %v368 = vrot.slane %v363, %v367
    %v386 = vunpack.c.l.b16 %v347
    %v387 = vunpack.c.l.b16 %v348
    %v388 = vunpack.c.l.b16 %v349
    %v389 = vunpack.c.l.b16 %v350
    %v390 = vunpack.c.l.b16 %v351
    %v391 = vunpack.c.l.b16 %v352
    %v392 = vunpack.c.l.b16 %v353
    %v393 = vunpack.c.l.b16 %v354
    %v394 = vunpack.c.l.b16 %v355
    %v395 = vunpack.c.l.b16 %v356
    %v396 = vunpack.c.l.b16 %v357
    %v397 = vunpack.c.l.b16 %v358
    %v398 = vunpack.c.l.b16 %v359
    %v399 = vunpack.c.l.b16 %v360
    %v400 = vunpack.c.l.b16 %v361
    %v401 = vunpack.c.l.b16 %v362
    %v402 = vpack.c.b16 %v387, %v386
    %v403 = vpack.c.b16 %v389, %v388
    %v404 = vpack.c.b16 %v391, %v390
    %v405 = vpack.c.b16 %v393, %v392
    %v406 = vpack.c.b16 %v395, %v394
    %v407 = vpack.c.b16 %v397, %v396
    %v408 = vpack.c.b16 %v399, %v398
    %v409 = vpack.c.b16 %v401, %v400
    %418 = vmatprep.subr.bf16.mxu0 0
    %419 = vmatpush1.bf16.msra.mxu0 %v402
    %420 = vmatprep.subr.bf16.mxu0 0
    %421 = vmatpush1.bf16.msra.mxu0 %v403
    %422 = vmatprep.subr.bf16.mxu0 0
    %423 = vmatpush1.bf16.msra.mxu0 %v404
    %424 = vmatprep.subr.bf16.mxu0 0
    %425 = vmatpush1.bf16.msra.mxu0 %v405
    %426 = vmatprep.subr.bf16.mxu0 0
    %427 = vmatpush1.bf16.msra.mxu0 %v406
    %428 = vmatprep.subr.bf16.mxu0 0
    %429 = vmatpush1.bf16.msra.mxu0 %v407
    %430 = vmatprep.subr.bf16.mxu0 0
    %431 = vmatpush1.bf16.msra.mxu0 %v408
    %432 = vmatprep.subr.bf16.mxu0 0
    %433 = vmatpush1.bf16.msra.mxu0 %v409
    %434 = vmatprep.subr.bf16.mxu0 0
    %435 = vmatpush1.bf16.msra.mxu0 0
    %436 = vmatprep.subr.bf16.mxu0 0
    %437 = vmatpush1.bf16.msra.mxu0 0
    %438 = vmatprep.subr.bf16.mxu0 0
    %439 = vmatpush1.bf16.msra.mxu0 0
    %440 = vmatprep.subr.bf16.mxu0 0
    %441 = vmatpush1.bf16.msra.mxu0 0
    %442 = vmatprep.subr.bf16.mxu0 0
    %443 = vmatpush1.bf16.msra.mxu0 0
    %444 = vmatprep.subr.bf16.mxu0 0
    %445 = vmatpush1.bf16.msra.mxu0 0
    %446 = vmatprep.subr.bf16.mxu0 0
    %447 = vmatpush1.bf16.msra.mxu0 0
    %448 = vmatprep.subr.bf16.mxu0 0
    %449 = vmatpush1.bf16.msra.mxu0 0
    %450 = vmatprep.mubr.bf16.mxu0 0
    %451 = vmatmul.mubr.bf16.gmra.mrb[0].mxu0 %v346
    %v452 = vpop.f32.mrb[0].mxu0
    %v453 = vadd.f32 %v368, %v452
    %v454 = vpop.f32.mrb[0].mxu0
    %v455 = vpop.f32.mrb[0].mxu0
    %v456 = vpop.f32.mrb[0].mxu0
    %457 = vdwg.mxu0
    %v458 = vpack.c.bf16 %v453, %v453
    %v459 = vld [vmem:[#allocation10] sm:$0xf]
    %v460 = vld [vmem:[#allocation10 + $0x4] sm:$0xf]
    %v461 = vld [vmem:[#allocation10 + $0x8] sm:$0xf]
    %v462 = vld [vmem:[#allocation10 + $0xc] sm:$0xf]
    %v463 = vld [vmem:[#allocation10 + $0x10] sm:$0xf]
    %v464 = vld [vmem:[#allocation10 + $0x14] sm:$0xf]
    %v465 = vld [vmem:[#allocation10 + $0x18] sm:$0xf]
    %v466 = vld [vmem:[#allocation10 + $0x1c] sm:$0xf]
    %v467 = vld [vmem:[#allocation10 + $0x20] sm:$0xf]
    %v468 = vld [vmem:[#allocation10 + $0x24] sm:$0xf]
    %v469 = vld [vmem:[#allocation10 + $0x28] sm:$0xf]
    %v470 = vld [vmem:[#allocation10 + $0x2c] sm:$0xf]
    %v471 = vld [vmem:[#allocation10 + $0x30] sm:$0xf]
    %v472 = vld [vmem:[#allocation10 + $0x34] sm:$0xf]
    %v473 = vld [vmem:[#allocation10 + $0x38] sm:$0xf]
    %v474 = vld [vmem:[#allocation10 + $0x3c] sm:$0xf]
    %v475 = vld [vmem:[%s8] sm:$0x1]
    %v477 = vlaneseq
    %v478 = vshrl.u32 %v477, 7
    %v479 = vsub.s32 0, %v478
    %v480 = vrot.slane %v475, %v479
    %v498 = vunpack.c.l.b16 %v459
    %v499 = vunpack.c.l.b16 %v460
    %v500 = vunpack.c.l.b16 %v461
    %v501 = vunpack.c.l.b16 %v462
    %v502 = vunpack.c.l.b16 %v463
    %v503 = vunpack.c.l.b16 %v464
    %v504 = vunpack.c.l.b16 %v465
    %v505 = vunpack.c.l.b16 %v466
    %v506 = vunpack.c.l.b16 %v467
    %v507 = vunpack.c.l.b16 %v468
    %v508 = vunpack.c.l.b16 %v469
    %v509 = vunpack.c.l.b16 %v470
    %v510 = vunpack.c.l.b16 %v471
    %v511 = vunpack.c.l.b16 %v472
    %v512 = vunpack.c.l.b16 %v473
    %v513 = vunpack.c.l.b16 %v474
    %v514 = vpack.c.b16 %v499, %v498
    %v515 = vpack.c.b16 %v501, %v500
    %v516 = vpack.c.b16 %v503, %v502
    %v517 = vpack.c.b16 %v505, %v504
    %v518 = vpack.c.b16 %v507, %v506
    %v519 = vpack.c.b16 %v509, %v508
    %v520 = vpack.c.b16 %v511, %v510
    %v521 = vpack.c.b16 %v513, %v512
    %530 = vmatprep.subr.bf16.mxu0 0
    %531 = vmatpush1.bf16.msra.mxu0 %v514
    %532 = vmatprep.subr.bf16.mxu0 0
    %533 = vmatpush1.bf16.msra.mxu0 %v515
    %534 = vmatprep.subr.bf16.mxu0 0
    %535 = vmatpush1.bf16.msra.mxu0 %v516
    %536 = vmatprep.subr.bf16.mxu0 0
    %537 = vmatpush1.bf16.msra.mxu0 %v517
    %538 = vmatprep.subr.bf16.mxu0 0
    %539 = vmatpush1.bf16.msra.mxu0 %v518
    %540 = vmatprep.subr.bf16.mxu0 0
    %541 = vmatpush1.bf16.msra.mxu0 %v519
    %542 = vmatprep.subr.bf16.mxu0 0
    %543 = vmatpush1.bf16.msra.mxu0 %v520
    %544 = vmatprep.subr.bf16.mxu0 0
    %545 = vmatpush1.bf16.msra.mxu0 %v521
    %546 = vmatprep.subr.bf16.mxu0 0
    %547 = vmatpush1.bf16.msra.mxu0 0
    %548 = vmatprep.subr.bf16.mxu0 0
    %549 = vmatpush1.bf16.msra.mxu0 0
    %550 = vmatprep.subr.bf16.mxu0 0
    %551 = vmatpush1.bf16.msra.mxu0 0
    %552 = vmatprep.subr.bf16.mxu0 0
    %553 = vmatpush1.bf16.msra.mxu0 0
    %554 = vmatprep.subr.bf16.mxu0 0
    %555 = vmatpush1.bf16.msra.mxu0 0
    %556 = vmatprep.subr.bf16.mxu0 0
    %557 = vmatpush1.bf16.msra.mxu0 0
    %558 = vmatprep.subr.bf16.mxu0 0
    %559 = vmatpush1.bf16.msra.mxu0 0
    %560 = vmatprep.subr.bf16.mxu0 0
    %561 = vmatpush1.bf16.msra.mxu0 0
    %562 = vmatprep.mubr.bf16.mxu0 0
    %563 = vmatmul.mubr.bf16.gmra.mrb[0].mxu0 %v458
    %v564 = vpop.f32.mrb[0].mxu0
    %v565 = vadd.f32 %v480, %v564
    %v566 = vpop.f32.mrb[0].mxu0
    %v567 = vpop.f32.mrb[0].mxu0
    %v568 = vpop.f32.mrb[0].mxu0
    %569 = vdwg.mxu0
    %v570 = vlaneseq
    %v571 = vand.u32 %v570, 127
    %vm572 = vcmp.lt.s32.totalorder %v571, 16
    %v573 = vsel %vm572, %v565, -1e+30
    %574 = vmax.xlane.f32.xlu0 %v573
    %v575 = vpop.xlane.xlu0 %574
    %v576 = vsub.f32 %v573, %v575
    %v577 = vmul.f32 %v576, 1.442695
    %v578 = vpow.pop %v577
    %579 = vadd.xlane.f32.xlu0 %v578
    %v580 = vpop.xlane.xlu0 %579
    %v581 = vlog2.pop %v580
    %v582 = vmul.f32 %v581, 0.6931472
    %v583 = vsub.f32 %v576, %v582
    %584 = vst [vmem:[#allocation11] sm:$0xff] %v583
    // Predicated region
    $region58: #{tpu_custom_call.1} parent=1 // pred_check
      _
    $region59: #{tpu_custom_call.1} parent=1 // pred_check_branch
      %586 = sbr.rel (0) target = $region61
    $region60: #{tpu_custom_call.1} parent=1 // pred_region
      %s588 = ssub.s32 128, 128
      %589 = vsyncadd [#allocation4], %s588
      %s591 = sshll.u32 [#allocation11], 4
      %s592 = int_to_ptr.vmem [resolvable:$true] %s591
      %594 = dma.vmem_to_hbm [thread:$0]  %s592, 128, %s9, [#allocation4]
    $region61: #{tpu_custom_call.1} parent=1 // pred_fallthru
      _
    // Predicated region
    $region62: #{tpu_custom_call.1} parent=1 // pred_check
      _
    $region63: #{tpu_custom_call.1} parent=1 // pred_check_branch
      %596 = sbr.rel (0) target = $region65
    $region64: #{tpu_custom_call.1} parent=1 // pred_region
      %597 = dma.done [#allocation4], 128
    $region65: #{tpu_custom_call.1} parent=1 // pred_fallthru
      _
    %598 = vsyncpa [#allocation3], 1
    %599 = vsyncpa [#allocation6], 1
    %600 = vsyncpa [#allocation9], 1
    %601 = vsyncpa [#allocation4], 1

// kernel: tpu_custom_call.1
$region0: #{tpu_custom_call.1}
  #allocation0 [shape = 'u32[]', space=smem, size = 0x4, offset = 0x4, fixed_abs, tag = 'smem constant byte address 0x4 - core index']
  #allocation1 [shape = 'u32[144,128]{1,0:T(1,128)}', space=vmem, size = 0x12000, scoped, tag = 'internal scratch']
  %s0 = inlined_call_operand.hbm [shape: bf16[8,128], index: 0, kind: input, shape index: {}]
  %s1 = inlined_call_operand.hbm [shape: bf16[128,128], index: 1, kind: input, shape index: {}]
  %s2 = inlined_call_operand.vmem [shape: f32[1,128], index: 2, kind: input, shape index: {}]
  %s3 = inlined_call_operand.hbm [shape: bf16[128,128], index: 3, kind: input, shape index: {}]
  %s4 = inlined_call_operand.vmem [shape: f32[1,128], index: 4, kind: input, shape index: {}]
  %s5 = inlined_call_operand.hbm [shape: bf16[128,128], index: 5, kind: input, shape index: {}]
  %s6 = inlined_call_operand.vmem [shape: f32[1,128], index: 6, kind: input, shape index: {}]
  %s7 = inlined_call_operand.hbm [shape: bf16[128,128], index: 7, kind: input, shape index: {}]
  %s8 = inlined_call_operand.vmem [shape: f32[1,128], index: 8, kind: input, shape index: {}]
  %s9 = inlined_call_operand.hbm [shape: f32[8,128], index: 9, kind: output, shape index: {}]
  %s10 = sld [smem:[#allocation0]]
  $region66: #{tpu_custom_call.1} parent=0
    _
  %s12 = ssub.s32 1, %s10
  %s13 = scalar_select 0, %s12, %s10
  $region1: #{tpu_custom_call.1} parent=0
    #allocation2 [shape = 'u8[2048]{0}', space=vmem, size = 0x800, scoped, tag = 'input window, operand 0, single buffered']
    #allocation3 [shape = 's32[1]{0}', space=sflag, size = 0x4, scoped, tag = 'scoped memory for tpu_custom_call.1']
    #allocation4 [shape = 's32[1]{0}', space=sflag, size = 0x4, scoped, tag = 'scoped memory for tpu_custom_call.1']
    #allocation5 [shape = 'u8[32768]{0}', space=vmem, size = 0x8000, scoped, tag = 'input window, operand 1, single buffered']
    #allocation6 [shape = 's32[1]{0}', space=sflag, size = 0x4, scoped, tag = 'scoped memory for tpu_custom_call.1']
    #allocation7 [shape = 'u8[32768]{0}', space=vmem, size = 0x8000, scoped, tag = 'input window, operand 3, single buffered']
    #allocation8 [shape = 'u8[32768]{0}', space=vmem, size = 0x8000, scoped, tag = 'input window, operand 5, single buffered']
    #allocation9 [shape = 's32[1]{0}', space=sflag, size = 0x4, scoped, tag = 'scoped memory for tpu_custom_call.1']
    #allocation10 [shape = 'u8[32768]{0}', space=vmem, size = 0x8000, scoped, tag = 'input window, operand 7, single buffered']
    #allocation11 [shape = 'u8[4096]{0}', space=vmem, size = 0x1000, scoped, tag = 'output window, operand 0, single buffered']
    %14 = vsyncpa [#allocation3], 0
    %15 = vsyncpa [#allocation6], 0
    %16 = vsyncpa [#allocation9], 0
    %17 = vsyncpa [#allocation4], 0
    // Predicated region
    $region2: #{tpu_custom_call.1} parent=1 // pred_check
      _
    $region3: #{tpu_custom_call.1} parent=1 // pred_check_branch
      %19 = sbr.rel (0) target = $region5
    $region4: #{tpu_custom_call.1} parent=1 // pred_region
      %s21 = ssub.s32 64, 64
      %22 = vsyncadd [#allocation3], %s21
      %s24 = sshll.u32 [#allocation2], 4
      %s25 = int_to_ptr.vmem [resolvable:$true] %s24
      %27 = dma.hbm_to_vmem [thread:$0]  %s0, 64, %s25, [#allocation3]
    $region5: #{tpu_custom_call.1} parent=1 // pred_fallthru
      _
    // Predicated region
    $region6: #{tpu_custom_call.1} parent=1 // pred_check
      _
    $region7: #{tpu_custom_call.1} parent=1 // pred_check_branch
      %29 = sbr.rel (0) target = $region9
    $region8: #{tpu_custom_call.1} parent=1 // pred_region
      %s31 = ssub.s32 1024, 1024
      %32 = vsyncadd [#allocation6], %s31
      %s33 = sshll.u32 [#allocation5], 4
      %s34 = int_to_ptr.vmem [resolvable:$true] %s33
      %39 = dma.hbm_to_vmem [thread:$0]  %s1, 1024, %s34, [#allocation6], 64, 64, 4
    $region9: #{tpu_custom_call.1} parent=1 // pred_fallthru
      _
    // Predicated region
    $region10: #{tpu_custom_call.1} parent=1 // pred_check
      _
    $region11: #{tpu_custom_call.1} parent=1 // pred_check_branch
      %41 = sbr.rel (0) target = $region13
    $region12: #{tpu_custom_call.1} parent=1 // pred_region
      _
    $region13: #{tpu_custom_call.1} parent=1 // pred_fallthru
      _
    // Predicated region
    $region14: #{tpu_custom_call.1} parent=1 // pred_check
      _
    $region15: #{tpu_custom_call.1} parent=1 // pred_check_branch
      %43 = sbr.rel (0) target = $region17
    $region16: #{tpu_custom_call.1} parent=1 // pred_region
      %s45 = ssub.s32 1024, 1024
      %46 = vsyncadd [#allocation6], %s45
      %s47 = sshll.u32 [#allocation7], 4
      %s48 = int_to_ptr.vmem [resolvable:$true] %s47
      %53 = dma.hbm_to_vmem [thread:$0]  %s3, 1024, %s48, [#allocation6], 64, 64, 4
    $region17: #{tpu_custom_call.1} parent=1 // pred_fallthru
      _
    // Predicated region
    $region18: #{tpu_custom_call.1} parent=1 // pred_check
      _
    $region19: #{tpu_custom_call.1} parent=1 // pred_check_branch
      %55 = sbr.rel (0) target = $region21
    $region20: #{tpu_custom_call.1} parent=1 // pred_region
      _
    $region21: #{tpu_custom_call.1} parent=1 // pred_fallthru
      _
    // Predicated region
    $region22: #{tpu_custom_call.1} parent=1 // pred_check
      _
    $region23: #{tpu_custom_call.1} parent=1 // pred_check_branch
      %57 = sbr.rel (0) target = $region25
    $region24: #{tpu_custom_call.1} parent=1 // pred_region
      %s59 = ssub.s32 1024, 1024
      %60 = vsyncadd [#allocation9], %s59
      %s61 = sshll.u32 [#allocation8], 4
      %s62 = int_to_ptr.vmem [resolvable:$true] %s61
      %67 = dma.hbm_to_vmem [thread:$0]  %s5, 1024, %s62, [#allocation9], 64, 64, 4
    $region25: #{tpu_custom_call.1} parent=1 // pred_fallthru
      _
    // Predicated region
    $region26: #{tpu_custom_call.1} parent=1 // pred_check
      _
    $region27: #{tpu_custom_call.1} parent=1 // pred_check_branch
      %69 = sbr.rel (0) target = $region29
    $region28: #{tpu_custom_call.1} parent=1 // pred_region
      _
    $region29: #{tpu_custom_call.1} parent=1 // pred_fallthru
      _
    // Predicated region
    $region30: #{tpu_custom_call.1} parent=1 // pred_check
      _
    $region31: #{tpu_custom_call.1} parent=1 // pred_check_branch
      %71 = sbr.rel (0) target = $region33
    $region32: #{tpu_custom_call.1} parent=1 // pred_region
      %s73 = ssub.s32 1024, 1024
      %74 = vsyncadd [#allocation9], %s73
      %s75 = sshll.u32 [#allocation10], 4
      %s76 = int_to_ptr.vmem [resolvable:$true] %s75
      %81 = dma.hbm_to_vmem [thread:$0]  %s7, 1024, %s76, [#allocation9], 64, 64, 4
    $region33: #{tpu_custom_call.1} parent=1 // pred_fallthru
      _
    // Predicated region
    $region34: #{tpu_custom_call.1} parent=1 // pred_check
      _
    $region35: #{tpu_custom_call.1} parent=1 // pred_check_branch
      %83 = sbr.rel (0) target = $region37
    $region36: #{tpu_custom_call.1} parent=1 // pred_region
      _
    $region37: #{tpu_custom_call.1} parent=1 // pred_fallthru
      _
    // Predicated region
    $region38: #{tpu_custom_call.1} parent=1 // pred_check
      _
    $region39: #{tpu_custom_call.1} parent=1 // pred_check_branch
      %85 = sbr.rel (0) target = $region41
    $region40: #{tpu_custom_call.1} parent=1 // pred_region
      %86 = dma.done [#allocation3], 64
    $region41: #{tpu_custom_call.1} parent=1 // pred_fallthru
      _
    // Predicated region
    $region42: #{tpu_custom_call.1} parent=1 // pred_check
      _
    $region43: #{tpu_custom_call.1} parent=1 // pred_check_branch
      %88 = sbr.rel (0) target = $region45
    $region44: #{tpu_custom_call.1} parent=1 // pred_region
      %89 = dma.done [#allocation6], 1024
    $region45: #{tpu_custom_call.1} parent=1 // pred_fallthru
      _
    // Predicated region
    $region46: #{tpu_custom_call.1} parent=1 // pred_check
      _
    $region47: #{tpu_custom_call.1} parent=1 // pred_check_branch
      %91 = sbr.rel (0) target = $region49
    $region48: #{tpu_custom_call.1} parent=1 // pred_region
      %92 = dma.done [#allocation6], 1024
    $region49: #{tpu_custom_call.1} parent=1 // pred_fallthru
      _
    // Predicated region
    $region50: #{tpu_custom_call.1} parent=1 // pred_check
      _
    $region51: #{tpu_custom_call.1} parent=1 // pred_check_branch
      %94 = sbr.rel (0) target = $region53
    $region52: #{tpu_custom_call.1} parent=1 // pred_region
      %95 = dma.done [#allocation9], 1024
    $region53: #{tpu_custom_call.1} parent=1 // pred_fallthru
      _
    // Predicated region
    $region54: #{tpu_custom_call.1} parent=1 // pred_check
      _
    $region55: #{tpu_custom_call.1} parent=1 // pred_check_branch
      %97 = sbr.rel (0) target = $region57
    $region56: #{tpu_custom_call.1} parent=1 // pred_region
      %98 = dma.done [#allocation9], 1024
    $region57: #{tpu_custom_call.1} parent=1 // pred_fallthru
      _
    %v100 = vld [vmem:[#allocation2] sm:$0xf]
    %v101 = vld [vmem:[#allocation5] sm:$0xf]
    %v102 = vld [vmem:[#allocation5 + $0x4] sm:$0xf]
    %v103 = vld [vmem:[#allocation5 + $0x8] sm:$0xf]
    %v104 = vld [vmem:[#allocation5 + $0xc] sm:$0xf]
    %v105 = vld [vmem:[#allocation5 + $0x10] sm:$0xf]
    %v106 = vld [vmem:[#allocation5 + $0x14] sm:$0xf]
    %v107 = vld [vmem:[#allocation5 + $0x18] sm:$0xf]
    %v108 = vld [vmem:[#allocation5 + $0x1c] sm:$0xf]
    %v109 = vld [vmem:[#allocation5 + $0x20] sm:$0xf]
    %v110 = vld [vmem:[#allocation5 + $0x24] sm:$0xf]
    %v111 = vld [vmem:[#allocation5 + $0x28] sm:$0xf]
    %v112 = vld [vmem:[#allocation5 + $0x2c] sm:$0xf]
    %v113 = vld [vmem:[#allocation5 + $0x30] sm:$0xf]
    %v114 = vld [vmem:[#allocation5 + $0x34] sm:$0xf]
    %v115 = vld [vmem:[#allocation5 + $0x38] sm:$0xf]
    %v116 = vld [vmem:[#allocation5 + $0x3c] sm:$0xf]
    %v117 = vld [vmem:[%s2] sm:$0x1]
    %v119 = vlaneseq
    %v120 = vshrl.u32 %v119, 7
    %v121 = vsub.s32 0, %v120
    %v122 = vrot.slane %v117, %v121
    %v140 = vunpack.c.l.b16 %v101
    %v141 = vunpack.c.l.b16 %v102
    %v142 = vunpack.c.l.b16 %v103
    %v143 = vunpack.c.l.b16 %v104
    %v144 = vunpack.c.l.b16 %v105
    %v145 = vunpack.c.l.b16 %v106
    %v146 = vunpack.c.l.b16 %v107
    %v147 = vunpack.c.l.b16 %v108
    %v148 = vunpack.c.l.b16 %v109
    %v149 = vunpack.c.l.b16 %v110
    %v150 = vunpack.c.l.b16 %v111
    %v151 = vunpack.c.l.b16 %v112
    %v152 = vunpack.c.l.b16 %v113
    %v153 = vunpack.c.l.b16 %v114
    %v154 = vunpack.c.l.b16 %v115
    %v155 = vunpack.c.l.b16 %v116
    %v156 = vpack.c.b16 %v141, %v140
    %v157 = vpack.c.b16 %v143, %v142
    %v158 = vpack.c.b16 %v145, %v144
    %v159 = vpack.c.b16 %v147, %v146
    %v160 = vpack.c.b16 %v149, %v148
    %v161 = vpack.c.b16 %v151, %v150
    %v162 = vpack.c.b16 %v153, %v152
    %v163 = vpack.c.b16 %v155, %v154
    %172 = vmatprep.subr.bf16.mxu0 0
    %173 = vmatpush1.bf16.msra.mxu0 %v156
    %174 = vmatprep.subr.bf16.mxu0 0
    %175 = vmatpush1.bf16.msra.mxu0 %v157
    %176 = vmatprep.subr.bf16.mxu0 0
    %177 = vmatpush1.bf16.msra.mxu0 %v158
    %178 = vmatprep.subr.bf16.mxu0 0
    %179 = vmatpush1.bf16.msra.mxu0 %v159
    %180 = vmatprep.subr.bf16.mxu0 0
    %181 = vmatpush1.bf16.msra.mxu0 %v160
    %182 = vmatprep.subr.bf16.mxu0 0
    %183 = vmatpush1.bf16.msra.mxu0 %v161
    %184 = vmatprep.subr.bf16.mxu0 0
    %185 = vmatpush1.bf16.msra.mxu0 %v162
    %186 = vmatprep.subr.bf16.mxu0 0
    %187 = vmatpush1.bf16.msra.mxu0 %v163
    %188 = vmatprep.subr.bf16.mxu0 0
    %189 = vmatpush1.bf16.msra.mxu0 0
    %190 = vmatprep.subr.bf16.mxu0 0
    %191 = vmatpush1.bf16.msra.mxu0 0
    %192 = vmatprep.subr.bf16.mxu0 0
    %193 = vmatpush1.bf16.msra.mxu0 0
    %194 = vmatprep.subr.bf16.mxu0 0
    %195 = vmatpush1.bf16.msra.mxu0 0
    %196 = vmatprep.subr.bf16.mxu0 0
    %197 = vmatpush1.bf16.msra.mxu0 0
    %198 = vmatprep.subr.bf16.mxu0 0
    %199 = vmatpush1.bf16.msra.mxu0 0
    %200 = vmatprep.subr.bf16.mxu0 0
    %201 = vmatpush1.bf16.msra.mxu0 0
    %202 = vmatprep.subr.bf16.mxu0 0
    %203 = vmatpush1.bf16.msra.mxu0 0
    %204 = vmatprep.mubr.bf16.mxu0 0
    %205 = vmatmul.mubr.bf16.gmra.mrb[0].mxu0 %v100
    %v206 = vpop.f32.mrb[0].mxu0
    %v207 = vadd.f32 %v122, %v206
    %v208 = vpop.f32.mrb[0].mxu0
    %v209 = vpop.f32.mrb[0].mxu0
    %v210 = vpop.f32.mrb[0].mxu0
    %211 = vdwg.mxu0
    %v212 = vmin.f32 %v207, 20.0
    %v213 = vmul.f32 %v212, 1.442695
    %v214 = vpow.pop %v213
    %v215 = vadd.f32 %v214, 2.0
    %v216 = vmul.f32 %v214, %v215
    %v217 = vmul.f32 %v207, %v216
    %v218 = vadd.f32 %v216, 2.0
    %v219 = vrcp.pop %v218
    %v220 = vmul.f32 %v217, %v219
    %vm221 = vcmp.gt.f32.partialorder %v207, 20.0
    %v222 = vsel %vm221, %v207, %v220
    %v223 = vpack.c.bf16 %v222, %v222
    %v224 = vld [vmem:[#allocation7] sm:$0xf]
    %v225 = vld [vmem:[#allocation7 + $0x4] sm:$0xf]
    %v226 = vld [vmem:[#allocation7 + $0x8] sm:$0xf]
    %v227 = vld [vmem:[#allocation7 + $0xc] sm:$0xf]
    %v228 = vld [vmem:[#allocation7 + $0x10] sm:$0xf]
    %v229 = vld [vmem:[#allocation7 + $0x14] sm:$0xf]
    %v230 = vld [vmem:[#allocation7 + $0x18] sm:$0xf]
    %v231 = vld [vmem:[#allocation7 + $0x1c] sm:$0xf]
    %v232 = vld [vmem:[#allocation7 + $0x20] sm:$0xf]
    %v233 = vld [vmem:[#allocation7 + $0x24] sm:$0xf]
    %v234 = vld [vmem:[#allocation7 + $0x28] sm:$0xf]
    %v235 = vld [vmem:[#allocation7 + $0x2c] sm:$0xf]
    %v236 = vld [vmem:[#allocation7 + $0x30] sm:$0xf]
    %v237 = vld [vmem:[#allocation7 + $0x34] sm:$0xf]
    %v238 = vld [vmem:[#allocation7 + $0x38] sm:$0xf]
    %v239 = vld [vmem:[#allocation7 + $0x3c] sm:$0xf]
    %v240 = vld [vmem:[%s4] sm:$0x1]
    %v242 = vlaneseq
    %v243 = vshrl.u32 %v242, 7
    %v244 = vsub.s32 0, %v243
    %v245 = vrot.slane %v240, %v244
    %v263 = vunpack.c.l.b16 %v224
    %v264 = vunpack.c.l.b16 %v225
    %v265 = vunpack.c.l.b16 %v226
    %v266 = vunpack.c.l.b16 %v227
    %v267 = vunpack.c.l.b16 %v228
    %v268 = vunpack.c.l.b16 %v229
    %v269 = vunpack.c.l.b16 %v230
    %v270 = vunpack.c.l.b16 %v231
    %v271 = vunpack.c.l.b16 %v232
    %v272 = vunpack.c.l.b16 %v233
    %v273 = vunpack.c.l.b16 %v234
    %v274 = vunpack.c.l.b16 %v235
    %v275 = vunpack.c.l.b16 %v236
    %v276 = vunpack.c.l.b16 %v237
    %v277 = vunpack.c.l.b16 %v238
    %v278 = vunpack.c.l.b16 %v239
    %v279 = vpack.c.b16 %v264, %v263
    %v280 = vpack.c.b16 %v266, %v265
    %v281 = vpack.c.b16 %v268, %v267
    %v282 = vpack.c.b16 %v270, %v269
    %v283 = vpack.c.b16 %v272, %v271
    %v284 = vpack.c.b16 %v274, %v273
    %v285 = vpack.c.b16 %v276, %v275
    %v286 = vpack.c.b16 %v278, %v277
    %295 = vmatprep.subr.bf16.mxu0 0
    %296 = vmatpush1.bf16.msra.mxu0 %v279
    %297 = vmatprep.subr.bf16.mxu0 0
    %298 = vmatpush1.bf16.msra.mxu0 %v280
    %299 = vmatprep.subr.bf16.mxu0 0
    %300 = vmatpush1.bf16.msra.mxu0 %v281
    %301 = vmatprep.subr.bf16.mxu0 0
    %302 = vmatpush1.bf16.msra.mxu0 %v282
    %303 = vmatprep.subr.bf16.mxu0 0
    %304 = vmatpush1.bf16.msra.mxu0 %v283
    %305 = vmatprep.subr.bf16.mxu0 0
    %306 = vmatpush1.bf16.msra.mxu0 %v284
    %307 = vmatprep.subr.bf16.mxu0 0
    %308 = vmatpush1.bf16.msra.mxu0 %v285
    %309 = vmatprep.subr.bf16.mxu0 0
    %310 = vmatpush1.bf16.msra.mxu0 %v286
    %311 = vmatprep.subr.bf16.mxu0 0
    %312 = vmatpush1.bf16.msra.mxu0 0
    %313 = vmatprep.subr.bf16.mxu0 0
    %314 = vmatpush1.bf16.msra.mxu0 0
    %315 = vmatprep.subr.bf16.mxu0 0
    %316 = vmatpush1.bf16.msra.mxu0 0
    %317 = vmatprep.subr.bf16.mxu0 0
    %318 = vmatpush1.bf16.msra.mxu0 0
    %319 = vmatprep.subr.bf16.mxu0 0
    %320 = vmatpush1.bf16.msra.mxu0 0
    %321 = vmatprep.subr.bf16.mxu0 0
    %322 = vmatpush1.bf16.msra.mxu0 0
    %323 = vmatprep.subr.bf16.mxu0 0
    %324 = vmatpush1.bf16.msra.mxu0 0
    %325 = vmatprep.subr.bf16.mxu0 0
    %326 = vmatpush1.bf16.msra.mxu0 0
    %327 = vmatprep.mubr.bf16.mxu0 0
    %328 = vmatmul.mubr.bf16.gmra.mrb[0].mxu0 %v223
    %v329 = vpop.f32.mrb[0].mxu0
    %v330 = vadd.f32 %v245, %v329
    %v331 = vpop.f32.mrb[0].mxu0
    %v332 = vpop.f32.mrb[0].mxu0
    %v333 = vpop.f32.mrb[0].mxu0
    %334 = vdwg.mxu0
    %v335 = vmin.f32 %v330, 20.0
    %v336 = vmul.f32 %v335, 1.442695
    %v337 = vpow.pop %v336
    %v338 = vadd.f32 %v337, 2.0
    %v339 = vmul.f32 %v337, %v338
    %v340 = vmul.f32 %v330, %v339
    %v341 = vadd.f32 %v339, 2.0
    %v342 = vrcp.pop %v341
    %v343 = vmul.f32 %v340, %v342
    %vm344 = vcmp.gt.f32.partialorder %v330, 20.0
    %v345 = vsel %vm344, %v330, %v343
    %v346 = vpack.c.bf16 %v345, %v345
    %v347 = vld [vmem:[#allocation8] sm:$0xf]
    %v348 = vld [vmem:[#allocation8 + $0x4] sm:$0xf]
    %v349 = vld [vmem:[#allocation8 + $0x8] sm:$0xf]
    %v350 = vld [vmem:[#allocation8 + $0xc] sm:$0xf]
    %v351 = vld [vmem:[#allocation8 + $0x10] sm:$0xf]
    %v352 = vld [vmem:[#allocation8 + $0x14] sm:$0xf]
    %v353 = vld [vmem:[#allocation8 + $0x18] sm:$0xf]
    %v354 = vld [vmem:[#allocation8 + $0x1c] sm:$0xf]
    %v355 = vld [vmem:[#allocation8 + $0x20] sm:$0xf]
    %v356 = vld [vmem:[#allocation8 + $0x24] sm:$0xf]
    %v357 = vld [vmem:[#allocation8 + $0x28] sm:$0xf]
    %v358 = vld [vmem:[#allocation8 + $0x2c] sm:$0xf]
    %v359 = vld [vmem:[#allocation8 + $0x30] sm:$0xf]
    %v360 = vld [vmem:[#allocation8 + $0x34] sm:$0xf]
    %v361 = vld [vmem:[#allocation8 + $0x38] sm:$0xf]
    %v362 = vld [vmem:[#allocation8 + $0x3c] sm:$0xf]
    %v363 = vld [vmem:[%s6] sm:$0x1]
    %v365 = vlaneseq
    %v366 = vshrl.u32 %v365, 7
    %v367 = vsub.s32 0, %v366
    %v368 = vrot.slane %v363, %v367
    %v386 = vunpack.c.l.b16 %v347
    %v387 = vunpack.c.l.b16 %v348
    %v388 = vunpack.c.l.b16 %v349
    %v389 = vunpack.c.l.b16 %v350
    %v390 = vunpack.c.l.b16 %v351
    %v391 = vunpack.c.l.b16 %v352
    %v392 = vunpack.c.l.b16 %v353
    %v393 = vunpack.c.l.b16 %v354
    %v394 = vunpack.c.l.b16 %v355
    %v395 = vunpack.c.l.b16 %v356
    %v396 = vunpack.c.l.b16 %v357
    %v397 = vunpack.c.l.b16 %v358
    %v398 = vunpack.c.l.b16 %v359
    %v399 = vunpack.c.l.b16 %v360
    %v400 = vunpack.c.l.b16 %v361
    %v401 = vunpack.c.l.b16 %v362
    %v402 = vpack.c.b16 %v387, %v386
    %v403 = vpack.c.b16 %v389, %v388
    %v404 = vpack.c.b16 %v391, %v390
    %v405 = vpack.c.b16 %v393, %v392
    %v406 = vpack.c.b16 %v395, %v394
    %v407 = vpack.c.b16 %v397, %v396
    %v408 = vpack.c.b16 %v399, %v398
    %v409 = vpack.c.b16 %v401, %v400
    %418 = vmatprep.subr.bf16.mxu0 0
    %419 = vmatpush1.bf16.msra.mxu0 %v402
    %420 = vmatprep.subr.bf16.mxu0 0
    %421 = vmatpush1.bf16.msra.mxu0 %v403
    %422 = vmatprep.subr.bf16.mxu0 0
    %423 = vmatpush1.bf16.msra.mxu0 %v404
    %424 = vmatprep.subr.bf16.mxu0 0
    %425 = vmatpush1.bf16.msra.mxu0 %v405
    %426 = vmatprep.subr.bf16.mxu0 0
    %427 = vmatpush1.bf16.msra.mxu0 %v406
    %428 = vmatprep.subr.bf16.mxu0 0
    %429 = vmatpush1.bf16.msra.mxu0 %v407
    %430 = vmatprep.subr.bf16.mxu0 0
    %431 = vmatpush1.bf16.msra.mxu0 %v408
    %432 = vmatprep.subr.bf16.mxu0 0
    %433 = vmatpush1.bf16.msra.mxu0 %v409
    %434 = vmatprep.subr.bf16.mxu0 0
    %435 = vmatpush1.bf16.msra.mxu0 0
    %436 = vmatprep.subr.bf16.mxu0 0
    %437 = vmatpush1.bf16.msra.mxu0 0
    %438 = vmatprep.subr.bf16.mxu0 0
    %439 = vmatpush1.bf16.msra.mxu0 0
    %440 = vmatprep.subr.bf16.mxu0 0
    %441 = vmatpush1.bf16.msra.mxu0 0
    %442 = vmatprep.subr.bf16.mxu0 0
    %443 = vmatpush1.bf16.msra.mxu0 0
    %444 = vmatprep.subr.bf16.mxu0 0
    %445 = vmatpush1.bf16.msra.mxu0 0
    %446 = vmatprep.subr.bf16.mxu0 0
    %447 = vmatpush1.bf16.msra.mxu0 0
    %448 = vmatprep.subr.bf16.mxu0 0
    %449 = vmatpush1.bf16.msra.mxu0 0
    %450 = vmatprep.mubr.bf16.mxu0 0
    %451 = vmatmul.mubr.bf16.gmra.mrb[0].mxu0 %v346
    %v452 = vpop.f32.mrb[0].mxu0
    %v453 = vadd.f32 %v368, %v452
    %v454 = vpop.f32.mrb[0].mxu0
    %v455 = vpop.f32.mrb[0].mxu0
    %v456 = vpop.f32.mrb[0].mxu0
    %457 = vdwg.mxu0
    %v458 = vpack.c.bf16 %v453, %v453
    %v459 = vld [vmem:[#allocation10] sm:$0xf]
    %v460 = vld [vmem:[#allocation10 + $0x4] sm:$0xf]
    %v461 = vld [vmem:[#allocation10 + $0x8] sm:$0xf]
    %v462 = vld [vmem:[#allocation10 + $0xc] sm:$0xf]
    %v463 = vld [vmem:[#allocation10 + $0x10] sm:$0xf]
    %v464 = vld [vmem:[#allocation10 + $0x14] sm:$0xf]
    %v465 = vld [vmem:[#allocation10 + $0x18] sm:$0xf]
    %v466 = vld [vmem:[#allocation10 + $0x1c] sm:$0xf]
    %v467 = vld [vmem:[#allocation10 + $0x20] sm:$0xf]
    %v468 = vld [vmem:[#allocation10 + $0x24] sm:$0xf]
    %v469 = vld [vmem:[#allocation10 + $0x28] sm:$0xf]
    %v470 = vld [vmem:[#allocation10 + $0x2c] sm:$0xf]
    %v471 = vld [vmem:[#allocation10 + $0x30] sm:$0xf]
    %v472 = vld [vmem:[#allocation10 + $0x34] sm:$0xf]
    %v473 = vld [vmem:[#allocation10 + $0x38] sm:$0xf]
    %v474 = vld [vmem:[#allocation10 + $0x3c] sm:$0xf]
    %v475 = vld [vmem:[%s8] sm:$0x1]
    %v477 = vlaneseq
    %v478 = vshrl.u32 %v477, 7
    %v479 = vsub.s32 0, %v478
    %v480 = vrot.slane %v475, %v479
    %v498 = vunpack.c.l.b16 %v459
    %v499 = vunpack.c.l.b16 %v460
    %v500 = vunpack.c.l.b16 %v461
    %v501 = vunpack.c.l.b16 %v462
    %v502 = vunpack.c.l.b16 %v463
    %v503 = vunpack.c.l.b16 %v464
    %v504 = vunpack.c.l.b16 %v465
    %v505 = vunpack.c.l.b16 %v466
    %v506 = vunpack.c.l.b16 %v467
    %v507 = vunpack.c.l.b16 %v468
    %v508 = vunpack.c.l.b16 %v469
    %v509 = vunpack.c.l.b16 %v470
    %v510 = vunpack.c.l.b16 %v471
    %v511 = vunpack.c.l.b16 %v472
    %v512 = vunpack.c.l.b16 %v473
    %v513 = vunpack.c.l.b16 %v474
    %v514 = vpack.c.b16 %v499, %v498
    %v515 = vpack.c.b16 %v501, %v500
    %v516 = vpack.c.b16 %v503, %v502
    %v517 = vpack.c.b16 %v505, %v504
    %v518 = vpack.c.b16 %v507, %v506
    %v519 = vpack.c.b16 %v509, %v508
    %v520 = vpack.c.b16 %v511, %v510
    %v521 = vpack.c.b16 %v513, %v512
    %530 = vmatprep.subr.bf16.mxu0 0
    %531 = vmatpush1.bf16.msra.mxu0 %v514
    %532 = vmatprep.subr.bf16.mxu0 0
    %533 = vmatpush1.bf16.msra.mxu0 %v515
    %534 = vmatprep.subr.bf16.mxu0 0
    %535 = vmatpush1.bf16.msra.mxu0 %v516
    %536 = vmatprep.subr.bf16.mxu0 0
    %537 = vmatpush1.bf16.msra.mxu0 %v517
    %538 = vmatprep.subr.bf16.mxu0 0
    %539 = vmatpush1.bf16.msra.mxu0 %v518
    %540 = vmatprep.subr.bf16.mxu0 0
    %541 = vmatpush1.bf16.msra.mxu0 %v519
    %542 = vmatprep.subr.bf16.mxu0 0
    %543 = vmatpush1.bf16.msra.mxu0 %v520
    %544 = vmatprep.subr.bf16.mxu0 0
    %545 = vmatpush1.bf16.msra.mxu0 %v521
    %546 = vmatprep.subr.bf16.mxu0 0
    %547 = vmatpush1.bf16.msra.mxu0 0
    %548 = vmatprep.subr.bf16.mxu0 0
    %549 = vmatpush1.bf16.msra.mxu0 0
    %550 = vmatprep.subr.bf16.mxu0 0
    %551 = vmatpush1.bf16.msra.mxu0 0
    %552 = vmatprep.subr.bf16.mxu0 0
    %553 = vmatpush1.bf16.msra.mxu0 0
    %554 = vmatprep.subr.bf16.mxu0 0
    %555 = vmatpush1.bf16.msra.mxu0 0
    %556 = vmatprep.subr.bf16.mxu0 0
    %557 = vmatpush1.bf16.msra.mxu0 0
    %558 = vmatprep.subr.bf16.mxu0 0
    %559 = vmatpush1.bf16.msra.mxu0 0
    %560 = vmatprep.subr.bf16.mxu0 0
    %561 = vmatpush1.bf16.msra.mxu0 0
    %562 = vmatprep.mubr.bf16.mxu0 0
    %563 = vmatmul.mubr.bf16.gmra.mrb[0].mxu0 %v458
    %v564 = vpop.f32.mrb[0].mxu0
    %v565 = vadd.f32 %v480, %v564
    %v566 = vpop.f32.mrb[0].mxu0
    %v567 = vpop.f32.mrb[0].mxu0
    %v568 = vpop.f32.mrb[0].mxu0
    %569 = vdwg.mxu0
    %v570 = vlaneseq
    %v571 = vand.u32 %v570, 127
    %vm572 = vcmp.lt.s32.totalorder %v571, 16
    %v573 = vsel %vm572, %v565, -1e+30
    %574 = vmax.xlane.f32.xlu0 %v573
    %v575 = vpop.xlane.xlu0 %574
    %v576 = vsub.f32 %v573, %v575
    %v577 = vmul.f32 %v576, 1.442695
    %v578 = vpow.pop %v577
    %579 = vadd.xlane.f32.xlu0 %v578
    %v580 = vpop.xlane.xlu0 %579
    %v581 = vlog2.pop %v580
    %v582 = vmul.f32 %v581, 0.6931472
    %v583 = vsub.f32 %v576, %v582
    %584 = vst [vmem:[#allocation11] sm:$0xff] %v583
    // Predicated region
    $region58: #{tpu_custom_call.1} parent=1 // pred_check
      _
    $region59: #{tpu_custom_call.1} parent=1 // pred_check_branch
      %586 = sbr.rel (0) target = $region61
    $region60: #{tpu_custom_call.1} parent=1 // pred_region
      %s588 = ssub.s32 128, 128
      %589 = vsyncadd [#allocation4], %s588
      %s591 = sshll.u32 [#allocation11], 4
      %s592 = int_to_ptr.vmem [resolvable:$true] %s591
      %594 = dma.vmem_to_hbm [thread:$0]  %s592, 128, %s9, [#allocation4]
    $region61: #{tpu_custom_call.1} parent=1 // pred_fallthru
      _
    // Predicated region
    $region62: #{tpu_custom_call.1} parent=1 // pred_check
      _
    $region63: #{tpu_custom_call.1} parent=1 // pred_check_branch
      %596 = sbr.rel (0) target = $region65
    $region64: #{tpu_custom_call.1} parent=1 // pred_region
      %597 = dma.done [#allocation4], 128
    $region65: #{tpu_custom_call.1} parent=1 // pred_fallthru
      _
    %598 = vsyncpa [#allocation3], 1
    %599 = vsyncpa [#allocation6], 1
    %600 = vsyncpa [#allocation9], 1
    %601 = vsyncpa [#allocation4], 1

</llo_original>
